<compile_context>
chip_gen: v7x
topology: tpu7x:2x2x1
jax: 0.10.0
libtpu: 0.0.40
codegen_flags: <defaults>
</compile_context>

<pallas_src>
import functools
import math

import jax
import jax.numpy as jnp
from jax.experimental import pallas as pl
from jax.experimental.pallas import tpu as pltpu


def _mha_kernel(q_ref, k_ref, v_ref, mb_ref,
                wqkv_ref, bqkv_ref, wo_ref, bo_ref,
                out_ref, *, n_heads, d_k):
    f32 = jnp.float32
    bf16 = jnp.bfloat16
    H = n_heads

    q = q_ref[0]            # (S, D) bf16
    k = k_ref[0]            # (S, D) bf16
    v = v_ref[0]            # (S, D) bf16
    mask_bias = mb_ref[0]   # (S, S) f32, values in {0, -1e9}

    # Full-width input projections: one (S, D) @ (D, D) MXU matmul each,
    # bf16 operands, f32 accumulation.  The 1/sqrt(d_k) scale is already
    # folded into W_q / b_q by the wrapper.
    qh = jnp.dot(q, wqkv_ref[0], preferred_element_type=f32) + bqkv_ref[0]   # (S, D)
    kh = jnp.dot(k, wqkv_ref[1], preferred_element_type=f32) + bqkv_ref[1]   # (S, D)
    vh = jnp.dot(v, wqkv_ref[2], preferred_element_type=f32) + bqkv_ref[2]   # (S, D)

    qhb = qh.astype(bf16)
    khb = kh.astype(bf16)
    vhb = vh.astype(bf16)

    # Scores / softmax / PV: heads split only here (static unrolled loop over
    # the H column blocks of width d_k; everything stays 2-D).
    ctx_parts = []
    for h in range(H):
        sl = slice(h * d_k, (h + 1) * d_k)
        q_h = qhb[:, sl]                                     # (S, d_k)
        k_h = khb[:, sl]                                     # (S, d_k)
        v_h = vhb[:, sl]                                     # (S, d_k)

        # q_h @ k_h^T via contraction over the last dims (no explicit .T).
        s_h = jnp.einsum('qe,ke->qk', q_h, k_h,
                         preferred_element_type=f32)         # (S, S) f32
        s_h = s_h + mask_bias                                # additive mask
        s_h = s_h - jnp.max(s_h, axis=-1, keepdims=True)     # stable softmax
        p = jnp.exp(s_h)
        denom = jnp.sum(p, axis=-1, keepdims=True)           # (S, 1), >= 1
        # TODO(synk): dropout on attention probabilities omitted (eval mode).

        # PV matmul on the UNnormalised probabilities, then normalise the
        # (S, d_k) context instead of the (S, S) probabilities.
        c_h = jnp.dot(p.astype(bf16), v_h, preferred_element_type=f32)
        c_h = c_h * pl.reciprocal(denom, approx=True)        # EUP reciprocal
        ctx_parts.append(c_h.astype(bf16))

    ctx = jnp.concatenate(ctx_parts, axis=-1)                # (S, D) bf16 (== concat heads)

    # Output projection: a single full-width (S, D) @ (D, D) matmul.
    out = jnp.dot(ctx, wo_ref[...], preferred_element_type=f32) + bo_ref[...]
    out_ref[0] = out.astype(out_ref.dtype)


def multi_head_attention(q, k, v, mask, params, *, n_heads):
    """q, k, v: (B, S, D).  mask: (S, S) shared or (B, S, S) per-batch, 0 = masked.
    params: PyTorch nn.Linear layout — 'wX' is (out, in), 'bX' is (D,)."""
    B, S, D = q.shape
    assert D % n_heads == 0
    H = n_heads
    d_k = D // H
    out_dtype = q.dtype
    f32 = jnp.float32
    bf16 = jnp.bfloat16
    scale = 1.0 / math.sqrt(d_k)

    # --- wrapper-side prep: bf16 MXU operands, lane-dense (D, D) weights ------
    qb = q.astype(bf16)
    kb = k.astype(bf16)
    vb = v.astype(bf16)

    # nn.Linear computes x @ W.T + b, so pass W.T (shape (D_in, D_out)).
    # 1/sqrt(d_k) is folded into the Q projection (weights AND bias).
    wqkv = jnp.stack([
        (params["wq"].T.astype(f32) * scale),
        params["wk"].T.astype(f32),
        params["wv"].T.astype(f32),
    ], axis=0).astype(bf16)                                   # (3, D, D) bf16
    bqkv = jnp.stack([
        params["bq"].astype(f32) * scale,
        params["bk"].astype(f32),
        params["bv"].astype(f32),
    ], axis=0).reshape(3, 1, D)                               # (3, 1, D) f32
    wo = params["wo"].T.astype(bf16)                          # (D, D) bf16
    bo = params["bo"].astype(f32).reshape(1, D)               # (1, D) f32

    # Additive mask bias (0 / -1e9).  De-duplicate if shared across the batch.
    if mask.ndim == 2:
        mask = mask[None]
    mask_bias = jnp.where(mask == 0, -1.0e9, 0.0).astype(f32)  # (Bm, S, S)
    if mask_bias.shape[0] == 1:
        mask_map = lambda b: (0, 0, 0)
    else:
        mask_map = lambda b: (b, 0, 0)

    kernel = functools.partial(_mha_kernel, n_heads=H, d_k=d_k)

    batched = pl.BlockSpec((1, S, D), lambda b: (b, 0, 0))
    msk = pl.BlockSpec((1, S, S), mask_map)
    w_qkv = pl.BlockSpec((3, D, D), lambda b: (0, 0, 0))
    b_qkv = pl.BlockSpec((3, 1, D), lambda b: (0, 0, 0))
    w_o = pl.BlockSpec((D, D), lambda b: (0, 0))
    b_o = pl.BlockSpec((1, D), lambda b: (0, 0))

    # TODO(synk): for large D, add pipeline_mode=pl.Buffered(1) to the weight
    #             BlockSpecs and raise vmem_limit_bytes; at D=32 it is moot.
    return pl.pallas_call(
        kernel,
        out_shape=jax.ShapeDtypeStruct((B, S, D), out_dtype),
        grid_spec=pltpu.PrefetchScalarGridSpec(
            num_scalar_prefetch=0,
            grid=(B,),
            in_specs=[batched, batched, batched, msk,
                      w_qkv, b_qkv, w_o, b_o],
            out_specs=batched,
        ),
        compiler_params=pltpu.CompilerParams(
            dimension_semantics=("parallel",)),
    )(qb, kb, vb, mask_bias, wqkv, bqkv, wo, bo)


def _reference(q, k, v, mask, params, *, n_heads):
    """Pure-JAX f32 reference mirroring the PyTorch forward (eval mode)."""
    B, S, D = q.shape
    d_k = D // n_heads

    def lin(x, w, b):
        return x @ w.T + b

    qp = lin(q, params["wq"], params["bq"]).reshape(B, S, n_heads, d_k).transpose(0, 2, 1, 3)
    kp = lin(k, params["wk"], params["bk"]).reshape(B, S, n_heads, d_k).transpose(0, 2, 1, 3)
    vp = lin(v, params["wv"], params["bv"]).reshape(B, S, n_heads, d_k).transpose(0, 2, 1, 3)

    scores = jnp.einsum("bhqd,bhkd->bhqk", qp, kp) / math.sqrt(d_k)
    m = mask if mask.ndim == 3 else mask[None]
    scores = jnp.where(m[:, None, :, :] == 0, -1.0e9, scores)
    probs = jax.nn.softmax(scores, axis=-1)
    ctx = jnp.einsum("bhqk,bhkd->bhqd", probs, vp)
    ctx = ctx.transpose(0, 2, 1, 3).reshape(B, S, D)
    return lin(ctx, params["wo"], params["bo"])


if __name__ == "__main__":
    B, S, D, H = 2, 8, 32, 4   # batch, seq, d_model, heads

    key = jax.random.PRNGKey(0)
    keys = jax.random.split(key, 12)

    q = jax.random.normal(keys[0], (B, S, D), jnp.float32)
    k = jax.random.normal(keys[1], (B, S, D), jnp.float32)
    v = jax.random.normal(keys[2], (B, S, D), jnp.float32)

    # Deterministic shared mask: lower-triangular (causal-style), broadcast over
    # heads AND batch (passed once as (S, S) — de-duplicated in the kernel).
    mask = jnp.tril(jnp.ones((S, S), jnp.int32))

    scale = 1.0 / math.sqrt(D)
    params = {
        "wq": jax.random.uniform(keys[3], (D, D), jnp.float32, -scale, scale),
        "bq": jax.random.uniform(keys[4], (D,), jnp.float32, -scale, scale),
        "wk": jax.random.uniform(keys[5], (D, D), jnp.float32, -scale, scale),
        "bk": jax.random.uniform(keys[6], (D,), jnp.float32, -scale, scale),
        "wv": jax.random.uniform(keys[7], (D, D), jnp.float32, -scale, scale),
        "bv": jax.random.uniform(keys[8], (D,), jnp.float32, -scale, scale),
        "wo": jax.random.uniform(keys[9], (D, D), jnp.float32, -scale, scale),
        "bo": jax.random.uniform(keys[10], (D,), jnp.float32, -scale, scale),
    }

    out = multi_head_attention(q, k, v, mask, params, n_heads=H)
    out = jax.block_until_ready(out)

    ref = _reference(q, k, v, mask, params, n_heads=H)
    assert out.shape == (B, S, D)
    # bf16 matmul operands (f32 accumulation) -> slightly relaxed tolerance.
    assert jnp.allclose(out, ref, atol=2e-2, rtol=2e-2), "mismatch vs reference"

    print("KERNEL_OK")
</pallas_src>

<mosaic_0001>
module attributes {stable_mosaic.version = 11 : i64} {
  func.func @_mha_kernel(%arg0: i32, %arg1: memref<1x8x32xbf16, #tpu.memory_space<vmem>>, %arg2: memref<1x8x32xbf16, #tpu.memory_space<vmem>>, %arg3: memref<1x8x32xbf16, #tpu.memory_space<vmem>>, %arg4: memref<1x8x8xf32, #tpu.memory_space<vmem>>, %arg5: memref<3x32x32xbf16, #tpu.memory_space<vmem>>, %arg6: memref<3x1x32xf32, #tpu.memory_space<vmem>>, %arg7: memref<32x32xbf16, #tpu.memory_space<vmem>>, %arg8: memref<1x32xf32, #tpu.memory_space<vmem>>, %arg9: memref<1x8x32xf32, #tpu.memory_space<vmem>>) attributes {dimension_semantics = [#tpu.dimension_semantics<parallel>], iteration_bounds = array<i64: 2>, scalar_prefetch = 0 : i64, scratch_operands = 0 : i64, tpu.core_type = #tpu.core_type<tc>, window_params = [{transform_indices = @transform_0, window_bounds = array<i64: 1, 8, 32>}, {transform_indices = @transform_1, window_bounds = array<i64: 1, 8, 32>}, {transform_indices = @transform_2, window_bounds = array<i64: 1, 8, 32>}, {pipeline_mode = #tpu.pipeline_mode<synchronous>, transform_indices = @transform_3, window_bounds = array<i64: 1, 8, 8>}, {pipeline_mode = #tpu.pipeline_mode<synchronous>, transform_indices = @transform_4, window_bounds = array<i64: 3, 32, 32>}, {pipeline_mode = #tpu.pipeline_mode<synchronous>, transform_indices = @transform_5, window_bounds = array<i64: 3, 1, 32>}, {pipeline_mode = #tpu.pipeline_mode<synchronous>, transform_indices = @transform_6, window_bounds = array<i64: 32, 32>}, {pipeline_mode = #tpu.pipeline_mode<synchronous>, transform_indices = @transform_7, window_bounds = array<i64: 1, 32>}, {transform_indices = @transform_8, window_bounds = array<i64: 1, 8, 32>}]} {
    %c0 = arith.constant 0 : index
    %c0_0 = arith.constant 0 : index
    %c0_1 = arith.constant 0 : index
    %0 = vector.load %arg1[%c0, %c0_0, %c0_1] : memref<1x8x32xbf16, #tpu.memory_space<vmem>>, vector<1x8x32xbf16>
    %1 = vector.shape_cast %0 : vector<1x8x32xbf16> to vector<8x32xbf16>
    %c0_2 = arith.constant 0 : index
    %c0_3 = arith.constant 0 : index
    %c0_4 = arith.constant 0 : index
    %2 = vector.load %arg2[%c0_2, %c0_3, %c0_4] : memref<1x8x32xbf16, #tpu.memory_space<vmem>>, vector<1x8x32xbf16>
    %3 = vector.shape_cast %2 : vector<1x8x32xbf16> to vector<8x32xbf16>
    %c0_5 = arith.constant 0 : index
    %c0_6 = arith.constant 0 : index
    %c0_7 = arith.constant 0 : index
    %4 = vector.load %arg3[%c0_5, %c0_6, %c0_7] : memref<1x8x32xbf16, #tpu.memory_space<vmem>>, vector<1x8x32xbf16>
    %5 = vector.shape_cast %4 : vector<1x8x32xbf16> to vector<8x32xbf16>
    %c0_8 = arith.constant 0 : index
    %c0_9 = arith.constant 0 : index
    %c0_10 = arith.constant 0 : index
    %6 = vector.load %arg4[%c0_8, %c0_9, %c0_10] : memref<1x8x8xf32, #tpu.memory_space<vmem>>, vector<1x8x8xf32>
    %7 = vector.shape_cast %6 : vector<1x8x8xf32> to vector<8x8xf32>
    %c0_11 = arith.constant 0 : index
    %c0_12 = arith.constant 0 : index
    %c0_13 = arith.constant 0 : index
    %8 = vector.load %arg5[%c0_11, %c0_12, %c0_13] : memref<3x32x32xbf16, #tpu.memory_space<vmem>>, vector<1x32x32xbf16>
    %9 = vector.shape_cast %8 : vector<1x32x32xbf16> to vector<32x32xbf16>
    %cst = arith.constant dense<0.000000e+00> : vector<8x32xf32>
    %10 = tpu.matmul %1, %9, %cst {dimension_numbers = #tpu.dot_dimension_numbers<[1], [0], [0], [1], [0, 0, 1, 1], [], []>} : vector<8x32xbf16>, vector<32x32xbf16>, vector<8x32xf32> -> vector<8x32xf32>
    %c0_14 = arith.constant 0 : index
    %c0_15 = arith.constant 0 : index
    %c0_16 = arith.constant 0 : index
    %11 = vector.load %arg6[%c0_14, %c0_15, %c0_16] : memref<3x1x32xf32, #tpu.memory_space<vmem>>, vector<1x1x32xf32>
    %12 = vector.shape_cast %11 : vector<1x1x32xf32> to vector<1x32xf32>
    %13 = vector.broadcast %12 : vector<1x32xf32> to vector<8x32xf32>
    %14 = arith.addf %10, %13 : vector<8x32xf32>
    %c1 = arith.constant 1 : index
    %c0_17 = arith.constant 0 : index
    %c0_18 = arith.constant 0 : index
    %15 = vector.load %arg5[%c1, %c0_17, %c0_18] : memref<3x32x32xbf16, #tpu.memory_space<vmem>>, vector<1x32x32xbf16>
    %16 = vector.shape_cast %15 : vector<1x32x32xbf16> to vector<32x32xbf16>
    %cst_19 = arith.constant dense<0.000000e+00> : vector<8x32xf32>
    %17 = tpu.matmul %3, %16, %cst_19 {dimension_numbers = #tpu.dot_dimension_numbers<[1], [0], [0], [1], [0, 0, 1, 1], [], []>} : vector<8x32xbf16>, vector<32x32xbf16>, vector<8x32xf32> -> vector<8x32xf32>
    %c1_20 = arith.constant 1 : index
    %c0_21 = arith.constant 0 : index
    %c0_22 = arith.constant 0 : index
    %18 = vector.load %arg6[%c1_20, %c0_21, %c0_22] : memref<3x1x32xf32, #tpu.memory_space<vmem>>, vector<1x1x32xf32>
    %19 = vector.shape_cast %18 : vector<1x1x32xf32> to vector<1x32xf32>
    %20 = vector.broadcast %19 : vector<1x32xf32> to vector<8x32xf32>
    %21 = arith.addf %17, %20 : vector<8x32xf32>
    %c2 = arith.constant 2 : index
    %c0_23 = arith.constant 0 : index
    %c0_24 = arith.constant 0 : index
    %22 = vector.load %arg5[%c2, %c0_23, %c0_24] : memref<3x32x32xbf16, #tpu.memory_space<vmem>>, vector<1x32x32xbf16>
    %23 = vector.shape_cast %22 : vector<1x32x32xbf16> to vector<32x32xbf16>
    %cst_25 = arith.constant dense<0.000000e+00> : vector<8x32xf32>
    %24 = tpu.matmul %5, %23, %cst_25 {dimension_numbers = #tpu.dot_dimension_numbers<[1], [0], [0], [1], [0, 0, 1, 1], [], []>} : vector<8x32xbf16>, vector<32x32xbf16>, vector<8x32xf32> -> vector<8x32xf32>
    %c2_26 = arith.constant 2 : index
    %c0_27 = arith.constant 0 : index
    %c0_28 = arith.constant 0 : index
    %25 = vector.load %arg6[%c2_26, %c0_27, %c0_28] : memref<3x1x32xf32, #tpu.memory_space<vmem>>, vector<1x1x32xf32>
    %26 = vector.shape_cast %25 : vector<1x1x32xf32> to vector<1x32xf32>
    %27 = vector.broadcast %26 : vector<1x32xf32> to vector<8x32xf32>
    %28 = arith.addf %24, %27 : vector<8x32xf32>
    %29 = arith.truncf %14 : vector<8x32xf32> to vector<8x32xbf16>
    %30 = arith.truncf %21 : vector<8x32xf32> to vector<8x32xbf16>
    %31 = arith.truncf %28 : vector<8x32xf32> to vector<8x32xbf16>
    %32 = vector.extract_strided_slice %29 {offsets = [0, 0], sizes = [8, 8], strides = [1, 1]} : vector<8x32xbf16> to vector<8x8xbf16>
    %33 = vector.extract_strided_slice %30 {offsets = [0, 0], sizes = [8, 8], strides = [1, 1]} : vector<8x32xbf16> to vector<8x8xbf16>
    %34 = vector.extract_strided_slice %31 {offsets = [0, 0], sizes = [8, 8], strides = [1, 1]} : vector<8x32xbf16> to vector<8x8xbf16>
    "tpu.trace_start"() <{level = 10 : i32, message = "qe,ke->qk"}> : () -> ()
    %cst_29 = arith.constant dense<0.000000e+00> : vector<8x8xf32>
    %35 = tpu.matmul %32, %33, %cst_29 {dimension_numbers = #tpu.dot_dimension_numbers<[1], [1], [0], [0], [0, 0, 1, 0], [], []>} : vector<8x8xbf16>, vector<8x8xbf16>, vector<8x8xf32> -> vector<8x8xf32>
    "tpu.trace_stop"() : () -> ()
    %36 = arith.addf %35, %7 : vector<8x8xf32>
    %cst_30 = arith.constant dense<0xFF800000> : vector<8xf32>
    %37 = vector.multi_reduction <maximumf>, %36, %cst_30 [1] : vector<8x8xf32> to vector<8xf32>
    %38 = vector.shape_cast %37 : vector<8xf32> to vector<8x1xf32>
    %39 = vector.broadcast %38 : vector<8x1xf32> to vector<8x8xf32>
    %40 = arith.subf %36, %39 : vector<8x8xf32>
    %41 = math.exp %40 : vector<8x8xf32>
    %cst_31 = arith.constant dense<0.000000e+00> : vector<8xf32>
    %42 = vector.multi_reduction <add>, %41, %cst_31 [1] : vector<8x8xf32> to vector<8xf32>
    %43 = vector.shape_cast %42 : vector<8xf32> to vector<8x1xf32>
    %44 = arith.truncf %41 : vector<8x8xf32> to vector<8x8xbf16>
    %cst_32 = arith.constant dense<0.000000e+00> : vector<8x8xf32>
    %45 = tpu.matmul %44, %34, %cst_32 {dimension_numbers = #tpu.dot_dimension_numbers<[1], [0], [0], [1], [0, 0, 1, 1], [], []>} : vector<8x8xbf16>, vector<8x8xbf16>, vector<8x8xf32> -> vector<8x8xf32>
    %46 = tpu.reciprocal %43 {approx = true} : vector<8x1xf32> -> vector<8x1xf32>
    %47 = vector.broadcast %46 : vector<8x1xf32> to vector<8x8xf32>
    %48 = arith.mulf %45, %47 : vector<8x8xf32>
    %49 = arith.truncf %48 : vector<8x8xf32> to vector<8x8xbf16>
    %50 = vector.extract_strided_slice %29 {offsets = [0, 8], sizes = [8, 8], strides = [1, 1]} : vector<8x32xbf16> to vector<8x8xbf16>
    %51 = vector.extract_strided_slice %30 {offsets = [0, 8], sizes = [8, 8], strides = [1, 1]} : vector<8x32xbf16> to vector<8x8xbf16>
    %52 = vector.extract_strided_slice %31 {offsets = [0, 8], sizes = [8, 8], strides = [1, 1]} : vector<8x32xbf16> to vector<8x8xbf16>
    "tpu.trace_start"() <{level = 10 : i32, message = "qe,ke->qk"}> : () -> ()
    %cst_33 = arith.constant dense<0.000000e+00> : vector<8x8xf32>
    %53 = tpu.matmul %50, %51, %cst_33 {dimension_numbers = #tpu.dot_dimension_numbers<[1], [1], [0], [0], [0, 0, 1, 0], [], []>} : vector<8x8xbf16>, vector<8x8xbf16>, vector<8x8xf32> -> vector<8x8xf32>
    "tpu.trace_stop"() : () -> ()
    %54 = arith.addf %53, %7 : vector<8x8xf32>
    %cst_34 = arith.constant dense<0xFF800000> : vector<8xf32>
    %55 = vector.multi_reduction <maximumf>, %54, %cst_34 [1] : vector<8x8xf32> to vector<8xf32>
    %56 = vector.shape_cast %55 : vector<8xf32> to vector<8x1xf32>
    %57 = vector.broadcast %56 : vector<8x1xf32> to vector<8x8xf32>
    %58 = arith.subf %54, %57 : vector<8x8xf32>
    %59 = math.exp %58 : vector<8x8xf32>
    %cst_35 = arith.constant dense<0.000000e+00> : vector<8xf32>
    %60 = vector.multi_reduction <add>, %59, %cst_35 [1] : vector<8x8xf32> to vector<8xf32>
    %61 = vector.shape_cast %60 : vector<8xf32> to vector<8x1xf32>
    %62 = arith.truncf %59 : vector<8x8xf32> to vector<8x8xbf16>
    %cst_36 = arith.constant dense<0.000000e+00> : vector<8x8xf32>
    %63 = tpu.matmul %62, %52, %cst_36 {dimension_numbers = #tpu.dot_dimension_numbers<[1], [0], [0], [1], [0, 0, 1, 1], [], []>} : vector<8x8xbf16>, vector<8x8xbf16>, vector<8x8xf32> -> vector<8x8xf32>
    %64 = tpu.reciprocal %61 {approx = true} : vector<8x1xf32> -> vector<8x1xf32>
    %65 = vector.broadcast %64 : vector<8x1xf32> to vector<8x8xf32>
    %66 = arith.mulf %63, %65 : vector<8x8xf32>
    %67 = arith.truncf %66 : vector<8x8xf32> to vector<8x8xbf16>
    %68 = vector.extract_strided_slice %29 {offsets = [0, 16], sizes = [8, 8], strides = [1, 1]} : vector<8x32xbf16> to vector<8x8xbf16>
    %69 = vector.extract_strided_slice %30 {offsets = [0, 16], sizes = [8, 8], strides = [1, 1]} : vector<8x32xbf16> to vector<8x8xbf16>
    %70 = vector.extract_strided_slice %31 {offsets = [0, 16], sizes = [8, 8], strides = [1, 1]} : vector<8x32xbf16> to vector<8x8xbf16>
    "tpu.trace_start"() <{level = 10 : i32, message = "qe,ke->qk"}> : () -> ()
    %cst_37 = arith.constant dense<0.000000e+00> : vector<8x8xf32>
    %71 = tpu.matmul %68, %69, %cst_37 {dimension_numbers = #tpu.dot_dimension_numbers<[1], [1], [0], [0], [0, 0, 1, 0], [], []>} : vector<8x8xbf16>, vector<8x8xbf16>, vector<8x8xf32> -> vector<8x8xf32>
    "tpu.trace_stop"() : () -> ()
    %72 = arith.addf %71, %7 : vector<8x8xf32>
    %cst_38 = arith.constant dense<0xFF800000> : vector<8xf32>
    %73 = vector.multi_reduction <maximumf>, %72, %cst_38 [1] : vector<8x8xf32> to vector<8xf32>
    %74 = vector.shape_cast %73 : vector<8xf32> to vector<8x1xf32>
    %75 = vector.broadcast %74 : vector<8x1xf32> to vector<8x8xf32>
    %76 = arith.subf %72, %75 : vector<8x8xf32>
    %77 = math.exp %76 : vector<8x8xf32>
    %cst_39 = arith.constant dense<0.000000e+00> : vector<8xf32>
    %78 = vector.multi_reduction <add>, %77, %cst_39 [1] : vector<8x8xf32> to vector<8xf32>
    %79 = vector.shape_cast %78 : vector<8xf32> to vector<8x1xf32>
    %80 = arith.truncf %77 : vector<8x8xf32> to vector<8x8xbf16>
    %cst_40 = arith.constant dense<0.000000e+00> : vector<8x8xf32>
    %81 = tpu.matmul %80, %70, %cst_40 {dimension_numbers = #tpu.dot_dimension_numbers<[1], [0], [0], [1], [0, 0, 1, 1], [], []>} : vector<8x8xbf16>, vector<8x8xbf16>, vector<8x8xf32> -> vector<8x8xf32>
    %82 = tpu.reciprocal %79 {approx = true} : vector<8x1xf32> -> vector<8x1xf32>
    %83 = vector.broadcast %82 : vector<8x1xf32> to vector<8x8xf32>
    %84 = arith.mulf %81, %83 : vector<8x8xf32>
    %85 = arith.truncf %84 : vector<8x8xf32> to vector<8x8xbf16>
    %86 = vector.extract_strided_slice %29 {offsets = [0, 24], sizes = [8, 8], strides = [1, 1]} : vector<8x32xbf16> to vector<8x8xbf16>
    %87 = vector.extract_strided_slice %30 {offsets = [0, 24], sizes = [8, 8], strides = [1, 1]} : vector<8x32xbf16> to vector<8x8xbf16>
    %88 = vector.extract_strided_slice %31 {offsets = [0, 24], sizes = [8, 8], strides = [1, 1]} : vector<8x32xbf16> to vector<8x8xbf16>
    "tpu.trace_start"() <{level = 10 : i32, message = "qe,ke->qk"}> : () -> ()
    %cst_41 = arith.constant dense<0.000000e+00> : vector<8x8xf32>
    %89 = tpu.matmul %86, %87, %cst_41 {dimension_numbers = #tpu.dot_dimension_numbers<[1], [1], [0], [0], [0, 0, 1, 0], [], []>} : vector<8x8xbf16>, vector<8x8xbf16>, vector<8x8xf32> -> vector<8x8xf32>
    "tpu.trace_stop"() : () -> ()
    %90 = arith.addf %89, %7 : vector<8x8xf32>
    %cst_42 = arith.constant dense<0xFF800000> : vector<8xf32>
    %91 = vector.multi_reduction <maximumf>, %90, %cst_42 [1] : vector<8x8xf32> to vector<8xf32>
    %92 = vector.shape_cast %91 : vector<8xf32> to vector<8x1xf32>
    %93 = vector.broadcast %92 : vector<8x1xf32> to vector<8x8xf32>
    %94 = arith.subf %90, %93 : vector<8x8xf32>
    %95 = math.exp %94 : vector<8x8xf32>
    %cst_43 = arith.constant dense<0.000000e+00> : vector<8xf32>
    %96 = vector.multi_reduction <add>, %95, %cst_43 [1] : vector<8x8xf32> to vector<8xf32>
    %97 = vector.shape_cast %96 : vector<8xf32> to vector<8x1xf32>
    %98 = arith.truncf %95 : vector<8x8xf32> to vector<8x8xbf16>
    %cst_44 = arith.constant dense<0.000000e+00> : vector<8x8xf32>
    %99 = tpu.matmul %98, %88, %cst_44 {dimension_numbers = #tpu.dot_dimension_numbers<[1], [0], [0], [1], [0, 0, 1, 1], [], []>} : vector<8x8xbf16>, vector<8x8xbf16>, vector<8x8xf32> -> vector<8x8xf32>
    %100 = tpu.reciprocal %97 {approx = true} : vector<8x1xf32> -> vector<8x1xf32>
    %101 = vector.broadcast %100 : vector<8x1xf32> to vector<8x8xf32>
    %102 = arith.mulf %99, %101 : vector<8x8xf32>
    %103 = arith.truncf %102 : vector<8x8xf32> to vector<8x8xbf16>
    %104 = tpu.concatenate %49, %67, %85, %103 in 1 : vector<8x8xbf16>, vector<8x8xbf16>, vector<8x8xbf16>, vector<8x8xbf16> -> vector<8x32xbf16>
    %c0_45 = arith.constant 0 : index
    %c0_46 = arith.constant 0 : index
    %105 = vector.load %arg7[%c0_45, %c0_46] : memref<32x32xbf16, #tpu.memory_space<vmem>>, vector<32x32xbf16>
    %cst_47 = arith.constant dense<0.000000e+00> : vector<8x32xf32>
    %106 = tpu.matmul %104, %105, %cst_47 {dimension_numbers = #tpu.dot_dimension_numbers<[1], [0], [0], [1], [0, 0, 1, 1], [], []>} : vector<8x32xbf16>, vector<32x32xbf16>, vector<8x32xf32> -> vector<8x32xf32>
    %c0_48 = arith.constant 0 : index
    %c0_49 = arith.constant 0 : index
    %107 = vector.load %arg8[%c0_48, %c0_49] : memref<1x32xf32, #tpu.memory_space<vmem>>, vector<1x32xf32>
    %108 = vector.broadcast %107 : vector<1x32xf32> to vector<8x32xf32>
    %109 = arith.addf %106, %108 : vector<8x32xf32>
    %c0_50 = arith.constant 0 : index
    %c0_51 = arith.constant 0 : index
    %c0_52 = arith.constant 0 : index
    %110 = vector.load %arg9[%c0_50, %c0_51, %c0_52] : memref<1x8x32xf32, #tpu.memory_space<vmem>>, vector<1x8x32xf32>
    %111 = vector.shape_cast %110 : vector<1x8x32xf32> to vector<8x32xf32>
    %112 = vector.shape_cast %109 : vector<8x32xf32> to vector<1x8x32xf32>
    tpu.vector_store %arg9[%c0_50, %c0_51, %c0_52], %112 {strides = array<i32>} : memref<1x8x32xf32, #tpu.memory_space<vmem>>, vector<1x8x32xf32>,
    return
  }
  func.func @transform_0(%arg0: i32) -> (i32, i32, i32) {
    %c0_i32 = arith.constant 0 : i32
    %c0_i32_0 = arith.constant 0 : i32
    %c0_i32_1 = arith.constant 0 : i32
    return %arg0, %c0_i32, %c0_i32_0 : i32, i32, i32
  }
  func.func @transform_1(%arg0: i32) -> (i32, i32, i32) {
    %c0_i32 = arith.constant 0 : i32
    %c0_i32_0 = arith.constant 0 : i32
    %c0_i32_1 = arith.constant 0 : i32
    return %arg0, %c0_i32, %c0_i32_0 : i32, i32, i32
  }
  func.func @transform_2(%arg0: i32) -> (i32, i32, i32) {
    %c0_i32 = arith.constant 0 : i32
    %c0_i32_0 = arith.constant 0 : i32
    %c0_i32_1 = arith.constant 0 : i32
    return %arg0, %c0_i32, %c0_i32_0 : i32, i32, i32
  }
  func.func @transform_3(%arg0: i32) -> (i32, i32, i32) {
    %c0_i32 = arith.constant 0 : i32
    %c0_i32_0 = arith.constant 0 : i32
    %c0_i32_1 = arith.constant 0 : i32
    %c0_i32_2 = arith.constant 0 : i32
    return %c0_i32, %c0_i32_0, %c0_i32_1 : i32, i32, i32
  }
  func.func @transform_4(%arg0: i32) -> (i32, i32, i32) {
    %c0_i32 = arith.constant 0 : i32
    %c0_i32_0 = arith.constant 0 : i32
    %c0_i32_1 = arith.constant 0 : i32
    %c0_i32_2 = arith.constant 0 : i32
    return %c0_i32, %c0_i32_0, %c0_i32_1 : i32, i32, i32
  }
  func.func @transform_5(%arg0: i32) -> (i32, i32, i32) {
    %c0_i32 = arith.constant 0 : i32
    %c0_i32_0 = arith.constant 0 : i32
    %c0_i32_1 = arith.constant 0 : i32
    %c0_i32_2 = arith.constant 0 : i32
    return %c0_i32, %c0_i32_0, %c0_i32_1 : i32, i32, i32
  }
  func.func @transform_6(%arg0: i32) -> (i32, i32) {
    %c0_i32 = arith.constant 0 : i32
    %c0_i32_0 = arith.constant 0 : i32
    %c0_i32_1 = arith.constant 0 : i32
    return %c0_i32, %c0_i32_0 : i32, i32
  }
  func.func @transform_7(%arg0: i32) -> (i32, i32) {
    %c0_i32 = arith.constant 0 : i32
    %c0_i32_0 = arith.constant 0 : i32
    %c0_i32_1 = arith.constant 0 : i32
    return %c0_i32, %c0_i32_0 : i32, i32
  }
  func.func @transform_8(%arg0: i32) -> (i32, i32, i32) {
    %c0_i32 = arith.constant 0 : i32
    %c0_i32_0 = arith.constant 0 : i32
    %c0_i32_1 = arith.constant 0 : i32
    return %arg0, %c0_i32, %c0_i32_0 : i32, i32, i32
  }
}

</mosaic_0001>

<llo_original>
// kernel: tpu_custom_call.1
$region0: #{tpu_custom_call.1}
  #allocation0 [shape = 'u32[]', space=smem, size = 0x4, offset = 0x4, fixed_abs, tag = 'smem constant byte address 0x4 - core index']
  #allocation1 [shape = 'u32[144,128]{1,0:T(1,128)}', space=vmem, size = 0x12000, scoped, tag = 'internal scratch']
  %s0 = inlined_call_operand.hbm [shape: bf16[2,8,32], index: 0, kind: input, shape index: {}]
  %s1 = inlined_call_operand.hbm [shape: bf16[2,8,32], index: 1, kind: input, shape index: {}]
  %s2 = inlined_call_operand.hbm [shape: bf16[2,8,32], index: 2, kind: input, shape index: {}]
  %s3 = inlined_call_operand.hbm [shape: f32[1,8,8], index: 3, kind: input, shape index: {}]
  %s4 = inlined_call_operand.hbm [shape: bf16[3,32,32], index: 4, kind: input, shape index: {}]
  %s5 = inlined_call_operand.vmem [shape: f32[3,1,32], index: 5, kind: input, shape index: {}]
  %s6 = inlined_call_operand.vmem [shape: bf16[32,32], index: 6, kind: input, shape index: {}]
  %s7 = inlined_call_operand.vmem [shape: f32[1,32], index: 7, kind: input, shape index: {}]
  %s8 = inlined_call_operand.hbm [shape: f32[2,8,32], index: 8, kind: output, shape index: {}]
  %s9 = sld [smem:[#allocation0]]
  $region85: #{tpu_custom_call.1} parent=0
    _
  %s11 = ssub.s32 1, %s9
  %s12 = scalar_select 0, %s11, %s9
  $region1: #{tpu_custom_call.1} parent=0
    #allocation2 [shape = 'u8[4096]{0}', space=vmem, size = 0x1000, scoped, tag = 'input window, operand 0']
    #allocation3 [shape = 's32[2]{0}', space=sflag, size = 0x8, scoped, tag = 'scoped memory for tpu_custom_call.1']
    #allocation4 [shape = 's32[2]{0}', space=sflag, size = 0x8, scoped, tag = 'scoped memory for tpu_custom_call.1']
    #allocation5 [shape = 'u8[4096]{0}', space=vmem, size = 0x1000, scoped, tag = 'input window, operand 1']
    #allocation6 [shape = 's32[2]{0}', space=sflag, size = 0x8, scoped, tag = 'scoped memory for tpu_custom_call.1']
    #allocation7 [shape = 'u8[4096]{0}', space=vmem, size = 0x1000, scoped, tag = 'input window, operand 2']
    #allocation8 [shape = 'u8[4096]{0}', space=vmem, size = 0x1000, scoped, tag = 'input window, operand 3, single buffered']
    #allocation9 [shape = 's32[1]{0}', space=sflag, size = 0x4, scoped, tag = 'scoped memory for tpu_custom_call.1']
    #allocation10 [shape = 'u8[24576]{0}', space=vmem, size = 0x6000, scoped, tag = 'input window, operand 4, single buffered']
    #allocation11 [shape = 'u8[8192]{0}', space=vmem, size = 0x2000, scoped, tag = 'output window, operand 0']
    %13 = vsyncpa [#allocation3], 0
    %s14 = scalar_lea.sflag [#allocation3], 1
    %15 = vsyncpa %s14, 0
    %16 = vsyncpa [#allocation6], 0
    %s17 = scalar_lea.sflag [#allocation6], 1
    %18 = vsyncpa %s17, 0
    %19 = vsyncpa [#allocation9], 0
    %20 = vsyncpa [#allocation4], 0
    %s21 = scalar_lea.sflag [#allocation4], 1
    %22 = vsyncpa %s21, 0
    loop: start=0, step=1, limit=4
    $region2: #{tpu_custom_call.1} parent=1 // loop_pre_header
      _
    $region3: #{tpu_custom_call.1} parent=1 // loop_header
      %s24 = sphi 0, %s28
      %p25 = scmp.ge.s32.totalorder %s24, 4
      %s34 = sphi 0, %s36
      %s37 = sphi 0, %s34
      %s38 = sphi 0, %s37
      %s54 = sphi 0, %s38
      %s60 = sphi 0, %s62
      %s63 = sphi 0, %s60
      %s64 = sphi 0, %s63
      %s80 = sphi 0, %s64
      %s86 = sphi 0, %s88
      %s89 = sphi 0, %s86
      %s90 = sphi 0, %s89
      %s106 = sphi 0, %s90
      %s110 = sphi 0, %s110
      %s112 = sphi 0, %s110
      %s113 = sphi 0, %s112
      %s127 = sphi 0, %s113
      %s131 = sphi 0, %s131
      %s133 = sphi 0, %s131
      %s134 = sphi 0, %s133
      %s148 = sphi 0, %s134
      %s152 = sphi 0, %s152
      %s154 = sphi 0, %s152
      %s155 = sphi 0, %s154
      %s169 = sphi 0, %s155
      %s173 = sphi 0, %s173
      %s175 = sphi 0, %s173
      %s176 = sphi 0, %s175
      %s190 = sphi 0, %s176
      %s194 = sphi 0, %s194
      %s196 = sphi 0, %s194
      %s197 = sphi 0, %s196
      %s211 = sphi 0, %s197
      %s217 = sphi 0, %s219
      %s220 = sphi 0, %s217
      %s221 = sphi 0, %s220
      %s237 = sphi 0, %s221
    $region4: #{tpu_custom_call.1} parent=1 // loop_header_branch
      %27 = sbr.rel (%p25) target = $region8
    $region5: #{tpu_custom_call.1} parent=1 // loop_body
      %s29 = ssub.s32 %s24, 1
      %s30 = ssub.s32 %s24, 2
      %s31 = sadd.s32 %s24, 1
      %s32 = ssub.s32 %s24, %s31
      %p33 = scmp.eq.s32.totalorder %s32, 0
      %s35 = sadd.s32 %s34, 1
      %s36 = scalar_select %p33, %s34, %s35
      %p39 = pneg %p33
      %p40 = scmp.eq.s32.totalorder %s24, 1
      %p41 = por %p39, %p40
      %p42 = scmp.ne.s32.totalorder %s34, %s37
      %p43 = scmp.eq.s32.totalorder %s24, 0
      %p44 = por %p42, %p43
      %p45 = scmp.ne.s32.totalorder %s34, %s37
      %p46 = scmp.eq.s32.totalorder %s29, 1
      %p47 = por %p45, %p46
      %p48 = scmp.ne.s32.totalorder %s37, %s38
      %p49 = scmp.eq.s32.totalorder %s29, 0
      %p50 = por %p48, %p49
      %p51 = scmp.ne.s32.totalorder %s37, %s38
      %p52 = scmp.eq.s32.totalorder %s30, 1
      %p53 = por %p51, %p52
      %p55 = scmp.ne.s32.totalorder %s38, %s54
      %p56 = scmp.eq.s32.totalorder %s30, 0
      %p57 = por %p55, %p56
      %s58 = ssub.s32 %s24, %s31
      %p59 = scmp.eq.s32.totalorder %s58, 0
      %s61 = sadd.s32 %s60, 1
      %s62 = scalar_select %p59, %s60, %s61
      %p65 = pneg %p59
      %p66 = scmp.eq.s32.totalorder %s24, 1
      %p67 = por %p65, %p66
      %p68 = scmp.ne.s32.totalorder %s60, %s63
      %p69 = scmp.eq.s32.totalorder %s24, 0
      %p70 = por %p68, %p69
      %p71 = scmp.ne.s32.totalorder %s60, %s63
      %p72 = scmp.eq.s32.totalorder %s29, 1
      %p73 = por %p71, %p72
      %p74 = scmp.ne.s32.totalorder %s63, %s64
      %p75 = scmp.eq.s32.totalorder %s29, 0
      %p76 = por %p74, %p75
      %p77 = scmp.ne.s32.totalorder %s63, %s64
      %p78 = scmp.eq.s32.totalorder %s30, 1
      %p79 = por %p77, %p78
      %p81 = scmp.ne.s32.totalorder %s64, %s80
      %p82 = scmp.eq.s32.totalorder %s30, 0
      %p83 = por %p81, %p82
      %s84 = ssub.s32 %s24, %s31
      %p85 = scmp.eq.s32.totalorder %s84, 0
      %s87 = sadd.s32 %s86, 1
      %s88 = scalar_select %p85, %s86, %s87
      %p91 = pneg %p85
      %p92 = scmp.eq.s32.totalorder %s24, 1
      %p93 = por %p91, %p92
      %p94 = scmp.ne.s32.totalorder %s86, %s89
      %p95 = scmp.eq.s32.totalorder %s24, 0
      %p96 = por %p94, %p95
      %p97 = scmp.ne.s32.totalorder %s86, %s89
      %p98 = scmp.eq.s32.totalorder %s29, 1
      %p99 = por %p97, %p98
      %p100 = scmp.ne.s32.totalorder %s89, %s90
      %p101 = scmp.eq.s32.totalorder %s29, 0
      %p102 = por %p100, %p101
      %p103 = scmp.ne.s32.totalorder %s89, %s90
      %p104 = scmp.eq.s32.totalorder %s30, 1
      %p105 = por %p103, %p104
      %p107 = scmp.ne.s32.totalorder %s90, %s106
      %p108 = scmp.eq.s32.totalorder %s30, 0
      %p109 = por %p107, %p108
      %s111 = sadd.s32 %s110, 1
      %p114 = scmp.eq.s32.totalorder %s24, 1
      %p115 = scmp.ne.s32.totalorder %s110, %s112
      %p116 = scmp.eq.s32.totalorder %s24, 0
      %p117 = por %p115, %p116
      %p118 = scmp.ne.s32.totalorder %s110, %s112
      %p119 = scmp.eq.s32.totalorder %s29, 1
      %p120 = por %p118, %p119
      %p121 = scmp.ne.s32.totalorder %s112, %s113
      %p122 = scmp.eq.s32.totalorder %s29, 0
      %p123 = por %p121, %p122
      %p124 = scmp.ne.s32.totalorder %s112, %s113
      %p125 = scmp.eq.s32.totalorder %s30, 1
      %p126 = por %p124, %p125
      %p128 = scmp.ne.s32.totalorder %s113, %s127
      %p129 = scmp.eq.s32.totalorder %s30, 0
      %p130 = por %p128, %p129
      %s132 = sadd.s32 %s131, 1
      %p135 = scmp.eq.s32.totalorder %s24, 1
      %p136 = scmp.ne.s32.totalorder %s131, %s133
      %p137 = scmp.eq.s32.totalorder %s24, 0
      %p138 = por %p136, %p137
      %p139 = scmp.ne.s32.totalorder %s131, %s133
      %p140 = scmp.eq.s32.totalorder %s29, 1
      %p141 = por %p139, %p140
      %p142 = scmp.ne.s32.totalorder %s133, %s134
      %p143 = scmp.eq.s32.totalorder %s29, 0
      %p144 = por %p142, %p143
      %p145 = scmp.ne.s32.totalorder %s133, %s134
      %p146 = scmp.eq.s32.totalorder %s30, 1
      %p147 = por %p145, %p146
      %p149 = scmp.ne.s32.totalorder %s134, %s148
      %p150 = scmp.eq.s32.totalorder %s30, 0
      %p151 = por %p149, %p150
      %s153 = sadd.s32 %s152, 1
      %p156 = scmp.eq.s32.totalorder %s24, 1
      %p157 = scmp.ne.s32.totalorder %s152, %s154
      %p158 = scmp.eq.s32.totalorder %s24, 0
      %p159 = por %p157, %p158
      %p160 = scmp.ne.s32.totalorder %s152, %s154
      %p161 = scmp.eq.s32.totalorder %s29, 1
      %p162 = por %p160, %p161
      %p163 = scmp.ne.s32.totalorder %s154, %s155
      %p164 = scmp.eq.s32.totalorder %s29, 0
      %p165 = por %p163, %p164
      %p166 = scmp.ne.s32.totalorder %s154, %s155
      %p167 = scmp.eq.s32.totalorder %s30, 1
      %p168 = por %p166, %p167
      %p170 = scmp.ne.s32.totalorder %s155, %s169
      %p171 = scmp.eq.s32.totalorder %s30, 0
      %p172 = por %p170, %p171
      %s174 = sadd.s32 %s173, 1
      %p177 = scmp.eq.s32.totalorder %s24, 1
      %p178 = scmp.ne.s32.totalorder %s173, %s175
      %p179 = scmp.eq.s32.totalorder %s24, 0
      %p180 = por %p178, %p179
      %p181 = scmp.ne.s32.totalorder %s173, %s175
      %p182 = scmp.eq.s32.totalorder %s29, 1
      %p183 = por %p181, %p182
      %p184 = scmp.ne.s32.totalorder %s175, %s176
      %p185 = scmp.eq.s32.totalorder %s29, 0
      %p186 = por %p184, %p185
      %p187 = scmp.ne.s32.totalorder %s175, %s176
      %p188 = scmp.eq.s32.totalorder %s30, 1
      %p189 = por %p187, %p188
      %p191 = scmp.ne.s32.totalorder %s176, %s190
      %p192 = scmp.eq.s32.totalorder %s30, 0
      %p193 = por %p191, %p192
      %s195 = sadd.s32 %s194, 1
      %p198 = scmp.eq.s32.totalorder %s24, 1
      %p199 = scmp.ne.s32.totalorder %s194, %s196
      %p200 = scmp.eq.s32.totalorder %s24, 0
      %p201 = por %p199, %p200
      %p202 = scmp.ne.s32.totalorder %s194, %s196
      %p203 = scmp.eq.s32.totalorder %s29, 1
      %p204 = por %p202, %p203
      %p205 = scmp.ne.s32.totalorder %s196, %s197
      %p206 = scmp.eq.s32.totalorder %s29, 0
      %p207 = por %p205, %p206
      %p208 = scmp.ne.s32.totalorder %s196, %s197
      %p209 = scmp.eq.s32.totalorder %s30, 1
      %p210 = por %p208, %p209
      %p212 = scmp.ne.s32.totalorder %s197, %s211
      %p213 = scmp.eq.s32.totalorder %s30, 0
      %p214 = por %p212, %p213
      %s215 = ssub.s32 %s24, %s31
      %p216 = scmp.eq.s32.totalorder %s215, 0
      %s218 = sadd.s32 %s217, 1
      %s219 = scalar_select %p216, %s217, %s218
      %p222 = pneg %p216
      %p223 = scmp.eq.s32.totalorder %s24, 1
      %p224 = por %p222, %p223
      %p225 = scmp.ne.s32.totalorder %s217, %s220
      %p226 = scmp.eq.s32.totalorder %s24, 0
      %p227 = por %p225, %p226
      %p228 = scmp.ne.s32.totalorder %s217, %s220
      %p229 = scmp.eq.s32.totalorder %s29, 1
      %p230 = por %p228, %p229
      %p231 = scmp.ne.s32.totalorder %s220, %s221
      %p232 = scmp.eq.s32.totalorder %s29, 0
      %p233 = por %p231, %p232
      %p234 = scmp.ne.s32.totalorder %s220, %s221
      %p235 = scmp.eq.s32.totalorder %s30, 1
      %p236 = por %p234, %p235
      %p238 = scmp.ne.s32.totalorder %s221, %s237
      %p239 = scmp.eq.s32.totalorder %s30, 0
      %p240 = por %p238, %p239
      %p241 = scmp.le.s32.totalorder 1, %s24
      %p242 = scmp.lt.s32.totalorder %s24, 3
      %p243 = pnand %p241, %p242
      %p244 = pneg %p243
      // Predicated region
      $region9: #{tpu_custom_call.1} parent=5 // pred_check
        _
      $region10: #{tpu_custom_call.1} parent=5 // pred_check_branch
        %246 = sbr.rel (%p243) target = $region12
      $region11: #{tpu_custom_call.1} parent=5 // pred_region
        %s247 = ssub.s32 %s24, 1
        // Predicated region
        $region13: #{tpu_custom_call.1} parent=11 // pred_check
          %p248 = pneg %p123
        $region14: #{tpu_custom_call.1} parent=11 // pred_check_branch
          %250 = sbr.rel (%p248) target = $region16
        $region15: #{tpu_custom_call.1} parent=11 // pred_region
          %s252 = ssub.s32 128, 128
          %253 = vsyncadd [#allocation9], %s252
          %s255 = sshll.u32 [#allocation8], 4
          %s256 = int_to_ptr.vmem [resolvable:$true] %s255
          %258 = dma.hbm_to_vmem [thread:$0]  %s3, 128, %s256, [#allocation9]
        $region16: #{tpu_custom_call.1} parent=11 // pred_fallthru
          _
        // Predicated region
        $region17: #{tpu_custom_call.1} parent=11 // pred_check
          %p259 = pneg %p144
        $region18: #{tpu_custom_call.1} parent=11 // pred_check_branch
          %261 = sbr.rel (%p259) target = $region20
        $region19: #{tpu_custom_call.1} parent=11 // pred_region
          %s263 = ssub.s32 768, 768
          %264 = vsyncadd [#allocation9], %s263
          %s265 = sshll.u32 [#allocation10], 4
          %s266 = int_to_ptr.vmem [resolvable:$true] %s265
          %271 = dma.hbm_to_vmem [thread:$0]  %s4, 768, %s266, [#allocation9], 64, 64, 4
        $region20: #{tpu_custom_call.1} parent=11 // pred_fallthru
          _
        // Predicated region
        $region21: #{tpu_custom_call.1} parent=11 // pred_check
          %p272 = pneg %p165
        $region22: #{tpu_custom_call.1} parent=11 // pred_check_branch
          %274 = sbr.rel (%p272) target = $region24
        $region23: #{tpu_custom_call.1} parent=11 // pred_region
          _
        $region24: #{tpu_custom_call.1} parent=11 // pred_fallthru
          _
        // Predicated region
        $region25: #{tpu_custom_call.1} parent=11 // pred_check
          %p275 = pneg %p186
        $region26: #{tpu_custom_call.1} parent=11 // pred_check_branch
          %277 = sbr.rel (%p275) target = $region28
        $region27: #{tpu_custom_call.1} parent=11 // pred_region
          _
        $region28: #{tpu_custom_call.1} parent=11 // pred_fallthru
          _
        // Predicated region
        $region29: #{tpu_custom_call.1} parent=11 // pred_check
          %p278 = pneg %p207
        $region30: #{tpu_custom_call.1} parent=11 // pred_check_branch
          %280 = sbr.rel (%p278) target = $region32
        $region31: #{tpu_custom_call.1} parent=11 // pred_region
          _
        $region32: #{tpu_custom_call.1} parent=11 // pred_fallthru
          _
      $region12: #{tpu_custom_call.1} parent=5 // pred_fallthru
        _
      %p281 = scmp.lt.s32.totalorder %s24, 2
      // Predicated region
      $region33: #{tpu_custom_call.1} parent=5 // pred_check
        %p282 = pneg %p281
      $region34: #{tpu_custom_call.1} parent=5 // pred_check_branch
        %284 = sbr.rel (%p282) target = $region36
      $region35: #{tpu_custom_call.1} parent=5 // pred_region
        // Predicated region
        $region37: #{tpu_custom_call.1} parent=35 // pred_check
          %p285 = pneg %p44
        $region38: #{tpu_custom_call.1} parent=35 // pred_check_branch
          %287 = sbr.rel (%p285) target = $region40
        $region39: #{tpu_custom_call.1} parent=35 // pred_region
          %s288 = sand.u32 %s34, 1
          %s289 = scalar_lea.sflag [#allocation3], %s288
          %s290 = sand.u32 %s34, 1
          %s291 = smul.addr %s290, 4
          %s292 = scalar_lea.vmem [#allocation2], %s291
          %s294 = ssub.s32 64, 64
          %295 = vsyncadd %s289, %s294
          %s296 = smul.addr %s24, 64
          %s297 = scalar_lea.hbm %s0, %s296
          %s299 = sshll.u32 %s292, 4
          %s300 = int_to_ptr.vmem [resolvable:$true] %s299
          %302 = dma.hbm_to_vmem [thread:$0]  %s297, 64, %s300, %s289
        $region40: #{tpu_custom_call.1} parent=35 // pred_fallthru
          _
        // Predicated region
        $region41: #{tpu_custom_call.1} parent=35 // pred_check
          %p303 = pneg %p70
        $region42: #{tpu_custom_call.1} parent=35 // pred_check_branch
          %305 = sbr.rel (%p303) target = $region44
        $region43: #{tpu_custom_call.1} parent=35 // pred_region
          %s306 = sand.u32 %s24, 1
          %s307 = scalar_lea.sflag [#allocation6], %s306
          %s308 = sand.u32 %s60, 1
          %s309 = smul.addr %s308, 4
          %s310 = scalar_lea.vmem [#allocation5], %s309
          %s312 = ssub.s32 64, 64
          %313 = vsyncadd %s307, %s312
          %s314 = smul.addr %s24, 64
          %s315 = scalar_lea.hbm %s1, %s314
          %s317 = sshll.u32 %s310, 4
          %s318 = int_to_ptr.vmem [resolvable:$true] %s317
          %320 = dma.hbm_to_vmem [thread:$0]  %s315, 64, %s318, %s307
        $region44: #{tpu_custom_call.1} parent=35 // pred_fallthru
          _
        // Predicated region
        $region45: #{tpu_custom_call.1} parent=35 // pred_check
          %p321 = pneg %p96
        $region46: #{tpu_custom_call.1} parent=35 // pred_check_branch
          %323 = sbr.rel (%p321) target = $region48
        $region47: #{tpu_custom_call.1} parent=35 // pred_region
          %s324 = sand.u32 %s24, 1
          %s325 = scalar_lea.sflag [#allocation6], %s324
          %s326 = sand.u32 %s86, 1
          %s327 = smul.addr %s326, 4
          %s328 = scalar_lea.vmem [#allocation7], %s327
          %s330 = ssub.s32 64, 64
          %331 = vsyncadd %s325, %s330
          %s332 = smul.addr %s24, 64
          %s333 = scalar_lea.hbm %s2, %s332
          %s335 = sshll.u32 %s328, 4
          %s336 = int_to_ptr.vmem [resolvable:$true] %s335
          %338 = dma.hbm_to_vmem [thread:$0]  %s333, 64, %s336, %s325
        $region48: #{tpu_custom_call.1} parent=35 // pred_fallthru
          _
      $region36: #{tpu_custom_call.1} parent=5 // pred_fallthru
        _
      %p339 = scmp.le.s32.totalorder 1, %s24
      %p340 = scmp.lt.s32.totalorder %s24, 3
      %p341 = pnand %p339, %p340
      %p342 = pneg %p341
      // Predicated region
      $region49: #{tpu_custom_call.1} parent=5 // pred_check
        _
      $region50: #{tpu_custom_call.1} parent=5 // pred_check_branch
        %344 = sbr.rel (%p341) target = $region52
      $region51: #{tpu_custom_call.1} parent=5 // pred_region
        %s345 = ssub.s32 %s24, 1
        %s346 = sand.u32 %s37, 1
        %s347 = scalar_lea.sflag [#allocation3], %s346
        %s348 = sand.u32 %s37, 1
        %s349 = smul.addr %s348, 4
        %s350 = scalar_lea.vmem [#allocation2], %s349
        // Predicated region
        $region53: #{tpu_custom_call.1} parent=51 // pred_check
          %p351 = pneg %p50
        $region54: #{tpu_custom_call.1} parent=51 // pred_check_branch
          %353 = sbr.rel (%p351) target = $region56
        $region55: #{tpu_custom_call.1} parent=51 // pred_region
          %354 = dma.done %s347, 64
        $region56: #{tpu_custom_call.1} parent=51 // pred_fallthru
          _
        %s355 = sand.u32 %s29, 1
        %s356 = scalar_lea.sflag [#allocation6], %s355
        %s357 = sand.u32 %s63, 1
        %s358 = smul.addr %s357, 4
        %s359 = scalar_lea.vmem [#allocation5], %s358
        // Predicated region
        $region57: #{tpu_custom_call.1} parent=51 // pred_check
          %p360 = pneg %p76
        $region58: #{tpu_custom_call.1} parent=51 // pred_check_branch
          %362 = sbr.rel (%p360) target = $region60
        $region59: #{tpu_custom_call.1} parent=51 // pred_region
          %363 = dma.done %s356, 64
        $region60: #{tpu_custom_call.1} parent=51 // pred_fallthru
          _
        %s364 = sand.u32 %s29, 1
        %s365 = scalar_lea.sflag [#allocation6], %s364
        %s366 = sand.u32 %s89, 1
        %s367 = smul.addr %s366, 4
        %s368 = scalar_lea.vmem [#allocation7], %s367
        // Predicated region
        $region61: #{tpu_custom_call.1} parent=51 // pred_check
          %p369 = pneg %p102
        $region62: #{tpu_custom_call.1} parent=51 // pred_check_branch
          %371 = sbr.rel (%p369) target = $region64
        $region63: #{tpu_custom_call.1} parent=51 // pred_region
          %372 = dma.done %s365, 64
        $region64: #{tpu_custom_call.1} parent=51 // pred_fallthru
          _
        // Predicated region
        $region65: #{tpu_custom_call.1} parent=51 // pred_check
          %p373 = pneg %p123
        $region66: #{tpu_custom_call.1} parent=51 // pred_check_branch
          %375 = sbr.rel (%p373) target = $region68
        $region67: #{tpu_custom_call.1} parent=51 // pred_region
          %376 = dma.done [#allocation9], 128
        $region68: #{tpu_custom_call.1} parent=51 // pred_fallthru
          _
        // Predicated region
        $region69: #{tpu_custom_call.1} parent=51 // pred_check
          %p377 = pneg %p144
        $region70: #{tpu_custom_call.1} parent=51 // pred_check_branch
          %379 = sbr.rel (%p377) target = $region72
        $region71: #{tpu_custom_call.1} parent=51 // pred_region
          %380 = dma.done [#allocation9], 768
        $region72: #{tpu_custom_call.1} parent=51 // pred_fallthru
          _
        %s381 = sand.u32 %s37, 1
        %s382 = scalar_lea.sflag [#allocation3], %s381
        %s383 = sand.u32 %s37, 1
        %s384 = smul.addr %s383, 4
        %s385 = scalar_lea.vmem [#allocation2], %s384
        %p386 = pneg %p50
        %p387 = pneg %p47
        %s388 = sand.u32 %s29, 1
        %s389 = scalar_lea.sflag [#allocation6], %s388
        %s390 = sand.u32 %s63, 1
        %s391 = smul.addr %s390, 4
        %s392 = scalar_lea.vmem [#allocation5], %s391
        %p393 = pneg %p76
        %p394 = pneg %p73
        %s395 = sand.u32 %s29, 1
        %s396 = scalar_lea.sflag [#allocation6], %s395
        %s397 = sand.u32 %s89, 1
        %s398 = smul.addr %s397, 4
        %s399 = scalar_lea.vmem [#allocation7], %s398
        %p400 = pneg %p102
        %p401 = pneg %p99
        %p402 = pneg %p123
        %p403 = pneg %p120
        %p404 = pneg %p144
        %p405 = pneg %p141
        %p406 = pneg %p165
        %p407 = pneg %p162
        %p408 = pneg %p186
        %p409 = pneg %p183
        %p410 = pneg %p207
        %p411 = pneg %p204
        %p412 = pneg %p233
        %p413 = pneg %p230
        %s414 = sand.u32 %s220, 1
        %s415 = scalar_lea.sflag [#allocation4], %s414
        %s416 = sand.u32 %s220, 1
        %s417 = smul.addr %s416, 8
        %s418 = scalar_lea.vmem [#allocation11], %s417
        %v420 = vld [vmem:[%s350] sm:$0xf]
        %v421 = vld [vmem:[%s359] sm:$0xf]
        %v422 = vld [vmem:[%s368] sm:$0xf]
        %v423 = vld [vmem:[#allocation8] sm:$0xff]
        %v424 = vld [vmem:[#allocation10] sm:$0xf]
        %v425 = vld [vmem:[#allocation10 + $0x4] sm:$0xf]
        %v426 = vld [vmem:[#allocation10 + $0x8] sm:$0xf]
        %v427 = vld [vmem:[#allocation10 + $0xc] sm:$0xf]
        %v428 = vld [vmem:[%s5] sm:$0x1]
        %v430 = vlaneseq
        %v431 = vshrl.u32 %v430, 7
        %v432 = vsub.s32 0, %v431
        %v433 = vrot.slane %v428, %v432
        %v439 = vunpack.c.l.b16 %v424
        %v440 = vunpack.c.l.b16 %v425
        %v441 = vunpack.c.l.b16 %v426
        %v442 = vunpack.c.l.b16 %v427
        %v443 = vpack.c.b16 %v440, %v439
        %v444 = vpack.c.b16 %v442, %v441
        %vm447 = vcmask 261120
        %v449 = vsel %vm447, %v420, 0
        %451 = vmatprep.subr.bf16.mxu0 0
        %452 = vmatpush1.bf16.msra.mxu0 %v443
        %453 = vmatprep.subr.bf16.mxu0 0
        %454 = vmatpush1.bf16.msra.mxu0 %v444
        %455 = vmatprep.subr.bf16.mxu0 0
        %456 = vmatpush1.bf16.msra.mxu0 0
        %457 = vmatprep.subr.bf16.mxu0 0
        %458 = vmatpush1.bf16.msra.mxu0 0
        %459 = vmatprep.subr.bf16.mxu0 0
        %460 = vmatpush1.bf16.msra.mxu0 0
        %461 = vmatprep.subr.bf16.mxu0 0
        %462 = vmatpush1.bf16.msra.mxu0 0
        %463 = vmatprep.subr.bf16.mxu0 0
        %464 = vmatpush1.bf16.msra.mxu0 0
        %465 = vmatprep.subr.bf16.mxu0 0
        %466 = vmatpush1.bf16.msra.mxu0 0
        %467 = vmatprep.subr.bf16.mxu0 0
        %468 = vmatpush1.bf16.msra.mxu0 0
        %469 = vmatprep.subr.bf16.mxu0 0
        %470 = vmatpush1.bf16.msra.mxu0 0
        %471 = vmatprep.subr.bf16.mxu0 0
        %472 = vmatpush1.bf16.msra.mxu0 0
        %473 = vmatprep.subr.bf16.mxu0 0
        %474 = vmatpush1.bf16.msra.mxu0 0
        %475 = vmatprep.subr.bf16.mxu0 0
        %476 = vmatpush1.bf16.msra.mxu0 0
        %477 = vmatprep.subr.bf16.mxu0 0
        %478 = vmatpush1.bf16.msra.mxu0 0
        %479 = vmatprep.subr.bf16.mxu0 0
        %480 = vmatpush1.bf16.msra.mxu0 0
        %481 = vmatprep.subr.bf16.mxu0 0
        %482 = vmatpush1.bf16.msra.mxu0 0
        %483 = vmatprep.mubr.bf16.mxu0 0
        %484 = vmatmul.mubr.bf16.gmra.mrb[0].mxu0 %v449
        %v485 = vpop.f32.mrb[0].mxu0
        %v486 = vadd.f32 %v433, %v485
        %v487 = vpop.f32.mrb[0].mxu0
        %v488 = vpop.f32.mrb[0].mxu0
        %v489 = vpop.f32.mrb[0].mxu0
        %490 = vdwg.mxu0
        %s491 = scalar_lea.vmem [#allocation10], 16
        %v492 = vld [vmem:[%s491] sm:$0xf]
        %v493 = vld [vmem:[%s491 + $0x4] sm:$0xf]
        %v494 = vld [vmem:[%s491 + $0x8] sm:$0xf]
        %v495 = vld [vmem:[%s491 + $0xc] sm:$0xf]
        %s496 = scalar_lea.vmem %s5, 1
        %v497 = vld [vmem:[%s496] sm:$0x1]
        %v499 = vlaneseq
        %v500 = vshrl.u32 %v499, 7
        %v501 = vsub.s32 0, %v500
        %v502 = vrot.slane %v497, %v501
        %v508 = vunpack.c.l.b16 %v492
        %v509 = vunpack.c.l.b16 %v493
        %v510 = vunpack.c.l.b16 %v494
        %v511 = vunpack.c.l.b16 %v495
        %v512 = vpack.c.b16 %v509, %v508
        %v513 = vpack.c.b16 %v511, %v510
        %v517 = vsel %vm447, %v421, 0
        %519 = vmatprep.subr.bf16.mxu0 0
        %520 = vmatpush1.bf16.msra.mxu0 %v512
        %521 = vmatprep.subr.bf16.mxu0 0
        %522 = vmatpush1.bf16.msra.mxu0 %v513
        %523 = vmatprep.subr.bf16.mxu0 0
        %524 = vmatpush1.bf16.msra.mxu0 0
        %525 = vmatprep.subr.bf16.mxu0 0
        %526 = vmatpush1.bf16.msra.mxu0 0
        %527 = vmatprep.subr.bf16.mxu0 0
        %528 = vmatpush1.bf16.msra.mxu0 0
        %529 = vmatprep.subr.bf16.mxu0 0
        %530 = vmatpush1.bf16.msra.mxu0 0
        %531 = vmatprep.subr.bf16.mxu0 0
        %532 = vmatpush1.bf16.msra.mxu0 0
        %533 = vmatprep.subr.bf16.mxu0 0
        %534 = vmatpush1.bf16.msra.mxu0 0
        %535 = vmatprep.subr.bf16.mxu0 0
        %536 = vmatpush1.bf16.msra.mxu0 0
        %537 = vmatprep.subr.bf16.mxu0 0
        %538 = vmatpush1.bf16.msra.mxu0 0
        %539 = vmatprep.subr.bf16.mxu0 0
        %540 = vmatpush1.bf16.msra.mxu0 0
        %541 = vmatprep.subr.bf16.mxu0 0
        %542 = vmatpush1.bf16.msra.mxu0 0
        %543 = vmatprep.subr.bf16.mxu0 0
        %544 = vmatpush1.bf16.msra.mxu0 0
        %545 = vmatprep.subr.bf16.mxu0 0
        %546 = vmatpush1.bf16.msra.mxu0 0
        %547 = vmatprep.subr.bf16.mxu0 0
        %548 = vmatpush1.bf16.msra.mxu0 0
        %549 = vmatprep.subr.bf16.mxu0 0
        %550 = vmatpush1.bf16.msra.mxu0 0
        %551 = vmatprep.mubr.bf16.mxu0 0
        %552 = vmatmul.mubr.bf16.gmra.mrb[0].mxu0 %v517
        %v553 = vpop.f32.mrb[0].mxu0
        %v554 = vadd.f32 %v502, %v553
        %v555 = vpop.f32.mrb[0].mxu0
        %v556 = vpop.f32.mrb[0].mxu0
        %v557 = vpop.f32.mrb[0].mxu0
        %558 = vdwg.mxu0
        %s559 = scalar_lea.vmem [#allocation10], 32
        %v560 = vld [vmem:[%s559] sm:$0xf]
        %v561 = vld [vmem:[%s559 + $0x4] sm:$0xf]
        %v562 = vld [vmem:[%s559 + $0x8] sm:$0xf]
        %v563 = vld [vmem:[%s559 + $0xc] sm:$0xf]
        %s564 = scalar_lea.vmem %s5, 2
        %v565 = vld [vmem:[%s564] sm:$0x1]
        %v567 = vlaneseq
        %v568 = vshrl.u32 %v567, 7
        %v569 = vsub.s32 0, %v568
        %v570 = vrot.slane %v565, %v569
        %v576 = vunpack.c.l.b16 %v560
        %v577 = vunpack.c.l.b16 %v561
        %v578 = vunpack.c.l.b16 %v562
        %v579 = vunpack.c.l.b16 %v563
        %v580 = vpack.c.b16 %v577, %v576
        %v581 = vpack.c.b16 %v579, %v578
        %v585 = vsel %vm447, %v422, 0
        %587 = vmatprep.subr.bf16.mxu0 0
        %588 = vmatpush1.bf16.msra.mxu0 %v580
        %589 = vmatprep.subr.bf16.mxu0 0
        %590 = vmatpush1.bf16.msra.mxu0 %v581
        %591 = vmatprep.subr.bf16.mxu0 0
        %592 = vmatpush1.bf16.msra.mxu0 0
        %593 = vmatprep.subr.bf16.mxu0 0
        %594 = vmatpush1.bf16.msra.mxu0 0
        %595 = vmatprep.subr.bf16.mxu0 0
        %596 = vmatpush1.bf16.msra.mxu0 0
        %597 = vmatprep.subr.bf16.mxu0 0
        %598 = vmatpush1.bf16.msra.mxu0 0
        %599 = vmatprep.subr.bf16.mxu0 0
        %600 = vmatpush1.bf16.msra.mxu0 0
        %601 = vmatprep.subr.bf16.mxu0 0
        %602 = vmatpush1.bf16.msra.mxu0 0
        %603 = vmatprep.subr.bf16.mxu0 0
        %604 = vmatpush1.bf16.msra.mxu0 0
        %605 = vmatprep.subr.bf16.mxu0 0
        %606 = vmatpush1.bf16.msra.mxu0 0
        %607 = vmatprep.subr.bf16.mxu0 0
        %608 = vmatpush1.bf16.msra.mxu0 0
        %609 = vmatprep.subr.bf16.mxu0 0
        %610 = vmatpush1.bf16.msra.mxu0 0
        %611 = vmatprep.subr.bf16.mxu0 0
        %612 = vmatpush1.bf16.msra.mxu0 0
        %613 = vmatprep.subr.bf16.mxu0 0
        %614 = vmatpush1.bf16.msra.mxu0 0
        %615 = vmatprep.subr.bf16.mxu0 0
        %616 = vmatpush1.bf16.msra.mxu0 0
        %617 = vmatprep.subr.bf16.mxu0 0
        %618 = vmatpush1.bf16.msra.mxu0 0
        %619 = vmatprep.mubr.bf16.mxu0 0
        %620 = vmatmul.mubr.bf16.gmra.mrb[0].mxu0 %v585
        %v621 = vpop.f32.mrb[0].mxu0
        %v622 = vadd.f32 %v570, %v621
        %v623 = vpop.f32.mrb[0].mxu0
        %v624 = vpop.f32.mrb[0].mxu0
        %v625 = vpop.f32.mrb[0].mxu0
        %626 = vdwg.mxu0
        %v627 = vpack.c.bf16 %v486, %v486
        %v628 = vpack.c.bf16 %v554, %v554
        %v629 = vpack.c.bf16 %v622, %v622
        %vm630 = vcmask 64512
        %v632 = vsel %vm630, %v627, 0
        %v635 = vsel %vm630, %v628, 0
        %637 = vmatprep.subr.bf16.mxu0 0
        %638 = vmatpush1.bf16.xpose.msra.mxu0 %v635
        %639 = vmatprep.subr.bf16.mxu0 0
        %640 = vmatpush1.bf16.xpose.msra.mxu0 0
        %641 = vmatprep.subr.bf16.mxu0 0
        %642 = vmatpush1.bf16.xpose.msra.mxu0 0
        %643 = vmatprep.subr.bf16.mxu0 0
        %644 = vmatpush1.bf16.xpose.msra.mxu0 0
        %645 = vmatprep.subr.bf16.mxu0 0
        %646 = vmatpush1.bf16.xpose.msra.mxu0 0
        %647 = vmatprep.subr.bf16.mxu0 0
        %648 = vmatpush1.bf16.xpose.msra.mxu0 0
        %649 = vmatprep.subr.bf16.mxu0 0
        %650 = vmatpush1.bf16.xpose.msra.mxu0 0
        %651 = vmatprep.subr.bf16.mxu0 0
        %652 = vmatpush1.bf16.xpose.msra.mxu0 0
        %653 = vmatprep.subr.bf16.mxu0 0
        %654 = vmatpush1.bf16.xpose.msra.mxu0 0
        %655 = vmatprep.subr.bf16.mxu0 0
        %656 = vmatpush1.bf16.xpose.msra.mxu0 0
        %657 = vmatprep.subr.bf16.mxu0 0
        %658 = vmatpush1.bf16.xpose.msra.mxu0 0
        %659 = vmatprep.subr.bf16.mxu0 0
        %660 = vmatpush1.bf16.xpose.msra.mxu0 0
        %661 = vmatprep.subr.bf16.mxu0 0
        %662 = vmatpush1.bf16.xpose.msra.mxu0 0
        %663 = vmatprep.subr.bf16.mxu0 0
        %664 = vmatpush1.bf16.xpose.msra.mxu0 0
        %665 = vmatprep.subr.bf16.mxu0 0
        %666 = vmatpush1.bf16.xpose.msra.mxu0 0
        %667 = vmatprep.subr.bf16.mxu0 0
        %668 = vmatpush1.bf16.xpose.msra.mxu0 0
        %669 = vmatprep.mubr.bf16.mxu0 0
        %670 = vmatmul.mubr.bf16.gmra.mrb[0].mxu0 %v632
        %v671 = vpop.f32.mrb[0].mxu0
        %v672 = vadd.f32 %v423, %v671
        %v673 = vpop.f32.mrb[0].mxu0
        %v674 = vpop.f32.mrb[0].mxu0
        %v675 = vpop.f32.mrb[0].mxu0
        %676 = vdwg.mxu0
        %v677 = vsel %vm630, %v672, -inf
        %678 = vmax.xlane.f32.xlu0 %v677
        %v679 = vpop.xlane.xlu0 %678
        %v680 = vsub.f32 %v672, %v679
        %v681 = vmul.f32 %v680, 1.442695
        %v682 = vpow.pop %v681
        %v683 = vsel %vm630, %v682, 0.0
        %684 = vadd.xlane.f32.xlu0 %v683
        %v685 = vpop.xlane.xlu0 %684
        %v686 = vpack.c.bf16 %v682, %v682
        %v688 = vsel %vm630, %v686, 0
        %vm690 = vcmask 1043456
        %v692 = vsel %vm690, %v629, 0
        %694 = vmatprep.subr.bf16.mxu0 0
        %695 = vmatpush1.bf16.msra.mxu0 %v692
        %696 = vmatprep.subr.bf16.mxu0 0
        %697 = vmatpush1.bf16.msra.mxu0 0
        %698 = vmatprep.subr.bf16.mxu0 0
        %699 = vmatpush1.bf16.msra.mxu0 0
        %700 = vmatprep.subr.bf16.mxu0 0
        %701 = vmatpush1.bf16.msra.mxu0 0
        %702 = vmatprep.subr.bf16.mxu0 0
        %703 = vmatpush1.bf16.msra.mxu0 0
        %704 = vmatprep.subr.bf16.mxu0 0
        %705 = vmatpush1.bf16.msra.mxu0 0
        %706 = vmatprep.subr.bf16.mxu0 0
        %707 = vmatpush1.bf16.msra.mxu0 0
        %708 = vmatprep.subr.bf16.mxu0 0
        %709 = vmatpush1.bf16.msra.mxu0 0
        %710 = vmatprep.subr.bf16.mxu0 0
        %711 = vmatpush1.bf16.msra.mxu0 0
        %712 = vmatprep.subr.bf16.mxu0 0
        %713 = vmatpush1.bf16.msra.mxu0 0
        %714 = vmatprep.subr.bf16.mxu0 0
        %715 = vmatpush1.bf16.msra.mxu0 0
        %716 = vmatprep.subr.bf16.mxu0 0
        %717 = vmatpush1.bf16.msra.mxu0 0
        %718 = vmatprep.subr.bf16.mxu0 0
        %719 = vmatpush1.bf16.msra.mxu0 0
        %720 = vmatprep.subr.bf16.mxu0 0
        %721 = vmatpush1.bf16.msra.mxu0 0
        %722 = vmatprep.subr.bf16.mxu0 0
        %723 = vmatpush1.bf16.msra.mxu0 0
        %724 = vmatprep.subr.bf16.mxu0 0
        %725 = vmatpush1.bf16.msra.mxu0 0
        %726 = vmatprep.mubr.bf16.mxu0 0
        %727 = vmatmul.mubr.bf16.gmra.mrb[0].mxu0 %v688
        %v728 = vpop.f32.mrb[0].mxu0
        %v729 = vadd.f32 0.0, %v728
        %v730 = vpop.f32.mrb[0].mxu0
        %v731 = vpop.f32.mrb[0].mxu0
        %v732 = vpop.f32.mrb[0].mxu0
        %733 = vdwg.mxu0
        %v734 = vrcp.pop %v685
        %v735 = vmul.f32 %v729, %v734
        %v736 = vpack.c.bf16 %v735, %v735
        %738 = vrot.lane.b32.xlu0 %v627, 120
        %v739 = vpop.permute.xlu0 %738
        %741 = vrot.lane.b32.xlu0 %v628, 120
        %v742 = vpop.permute.xlu0 %741
        %v744 = vsel %vm630, %v739, 0
        %v747 = vsel %vm630, %v742, 0
        %749 = vmatprep.subr.bf16.mxu0 0
        %750 = vmatpush1.bf16.xpose.msra.mxu0 %v747
        %751 = vmatprep.subr.bf16.mxu0 0
        %752 = vmatpush1.bf16.xpose.msra.mxu0 0
        %753 = vmatprep.subr.bf16.mxu0 0
        %754 = vmatpush1.bf16.xpose.msra.mxu0 0
        %755 = vmatprep.subr.bf16.mxu0 0
        %756 = vmatpush1.bf16.xpose.msra.mxu0 0
        %757 = vmatprep.subr.bf16.mxu0 0
        %758 = vmatpush1.bf16.xpose.msra.mxu0 0
        %759 = vmatprep.subr.bf16.mxu0 0
        %760 = vmatpush1.bf16.xpose.msra.mxu0 0
        %761 = vmatprep.subr.bf16.mxu0 0
        %762 = vmatpush1.bf16.xpose.msra.mxu0 0
        %763 = vmatprep.subr.bf16.mxu0 0
        %764 = vmatpush1.bf16.xpose.msra.mxu0 0
        %765 = vmatprep.subr.bf16.mxu0 0
        %766 = vmatpush1.bf16.xpose.msra.mxu0 0
        %767 = vmatprep.subr.bf16.mxu0 0
        %768 = vmatpush1.bf16.xpose.msra.mxu0 0
        %769 = vmatprep.subr.bf16.mxu0 0
        %770 = vmatpush1.bf16.xpose.msra.mxu0 0
        %771 = vmatprep.subr.bf16.mxu0 0
        %772 = vmatpush1.bf16.xpose.msra.mxu0 0
        %773 = vmatprep.subr.bf16.mxu0 0
        %774 = vmatpush1.bf16.xpose.msra.mxu0 0
        %775 = vmatprep.subr.bf16.mxu0 0
        %776 = vmatpush1.bf16.xpose.msra.mxu0 0
        %777 = vmatprep.subr.bf16.mxu0 0
        %778 = vmatpush1.bf16.xpose.msra.mxu0 0
        %779 = vmatprep.subr.bf16.mxu0 0
        %780 = vmatpush1.bf16.xpose.msra.mxu0 0
        %781 = vmatprep.mubr.bf16.mxu0 0
        %782 = vmatmul.mubr.bf16.gmra.mrb[0].mxu0 %v744
        %v783 = vpop.f32.mrb[0].mxu0
        %v784 = vadd.f32 %v423, %v783
        %v785 = vpop.f32.mrb[0].mxu0
        %v786 = vpop.f32.mrb[0].mxu0
        %v787 = vpop.f32.mrb[0].mxu0
        %788 = vdwg.mxu0
        %v789 = vsel %vm630, %v784, -inf
        %790 = vmax.xlane.f32.xlu0 %v789
        %v791 = vpop.xlane.xlu0 %790
        %v792 = vsub.f32 %v784, %v791
        %v793 = vmul.f32 %v792, 1.442695
        %v794 = vpow.pop %v793
        %v795 = vsel %vm630, %v794, 0.0
        %796 = vadd.xlane.f32.xlu0 %v795
        %v797 = vpop.xlane.xlu0 %796
        %v798 = vpack.c.bf16 %v794, %v794
        %800 = vrot.lane.b32.xlu0 %v629, 120
        %v801 = vpop.permute.xlu0 %800
        %v803 = vsel %vm630, %v798, 0
        %v806 = vsel %vm690, %v801, 0
        %808 = vmatprep.subr.bf16.mxu0 0
        %809 = vmatpush1.bf16.msra.mxu0 %v806
        %810 = vmatprep.subr.bf16.mxu0 0
        %811 = vmatpush1.bf16.msra.mxu0 0
        %812 = vmatprep.subr.bf16.mxu0 0
        %813 = vmatpush1.bf16.msra.mxu0 0
        %814 = vmatprep.subr.bf16.mxu0 0
        %815 = vmatpush1.bf16.msra.mxu0 0
        %816 = vmatprep.subr.bf16.mxu0 0
        %817 = vmatpush1.bf16.msra.mxu0 0
        %818 = vmatprep.subr.bf16.mxu0 0
        %819 = vmatpush1.bf16.msra.mxu0 0
        %820 = vmatprep.subr.bf16.mxu0 0
        %821 = vmatpush1.bf16.msra.mxu0 0
        %822 = vmatprep.subr.bf16.mxu0 0
        %823 = vmatpush1.bf16.msra.mxu0 0
        %824 = vmatprep.subr.bf16.mxu0 0
        %825 = vmatpush1.bf16.msra.mxu0 0
        %826 = vmatprep.subr.bf16.mxu0 0
        %827 = vmatpush1.bf16.msra.mxu0 0
        %828 = vmatprep.subr.bf16.mxu0 0
        %829 = vmatpush1.bf16.msra.mxu0 0
        %830 = vmatprep.subr.bf16.mxu0 0
        %831 = vmatpush1.bf16.msra.mxu0 0
        %832 = vmatprep.subr.bf16.mxu0 0
        %833 = vmatpush1.bf16.msra.mxu0 0
        %834 = vmatprep.subr.bf16.mxu0 0
        %835 = vmatpush1.bf16.msra.mxu0 0
        %836 = vmatprep.subr.bf16.mxu0 0
        %837 = vmatpush1.bf16.msra.mxu0 0
        %838 = vmatprep.subr.bf16.mxu0 0
        %839 = vmatpush1.bf16.msra.mxu0 0
        %840 = vmatprep.mubr.bf16.mxu0 0
        %841 = vmatmul.mubr.bf16.gmra.mrb[0].mxu0 %v803
        %v842 = vpop.f32.mrb[0].mxu0
        %v843 = vadd.f32 0.0, %v842
        %v844 = vpop.f32.mrb[0].mxu0
        %v845 = vpop.f32.mrb[0].mxu0
        %v846 = vpop.f32.mrb[0].mxu0
        %847 = vdwg.mxu0
        %v848 = vrcp.pop %v797
        %v849 = vmul.f32 %v843, %v848
        %v850 = vpack.c.bf16 %v849, %v849
        %851 = vrot.lane.b32.xlu0 %v627, 112
        %v852 = vpop.permute.xlu0 %851
        %853 = vrot.lane.b32.xlu0 %v628, 112
        %v854 = vpop.permute.xlu0 %853
        %v856 = vsel %vm630, %v852, 0
        %v859 = vsel %vm630, %v854, 0
        %861 = vmatprep.subr.bf16.mxu0 0
        %862 = vmatpush1.bf16.xpose.msra.mxu0 %v859
        %863 = vmatprep.subr.bf16.mxu0 0
        %864 = vmatpush1.bf16.xpose.msra.mxu0 0
        %865 = vmatprep.subr.bf16.mxu0 0
        %866 = vmatpush1.bf16.xpose.msra.mxu0 0
        %867 = vmatprep.subr.bf16.mxu0 0
        %868 = vmatpush1.bf16.xpose.msra.mxu0 0
        %869 = vmatprep.subr.bf16.mxu0 0
        %870 = vmatpush1.bf16.xpose.msra.mxu0 0
        %871 = vmatprep.subr.bf16.mxu0 0
        %872 = vmatpush1.bf16.xpose.msra.mxu0 0
        %873 = vmatprep.subr.bf16.mxu0 0
        %874 = vmatpush1.bf16.xpose.msra.mxu0 0
        %875 = vmatprep.subr.bf16.mxu0 0
        %876 = vmatpush1.bf16.xpose.msra.mxu0 0
        %877 = vmatprep.subr.bf16.mxu0 0
        %878 = vmatpush1.bf16.xpose.msra.mxu0 0
        %879 = vmatprep.subr.bf16.mxu0 0
        %880 = vmatpush1.bf16.xpose.msra.mxu0 0
        %881 = vmatprep.subr.bf16.mxu0 0
        %882 = vmatpush1.bf16.xpose.msra.mxu0 0
        %883 = vmatprep.subr.bf16.mxu0 0
        %884 = vmatpush1.bf16.xpose.msra.mxu0 0
        %885 = vmatprep.subr.bf16.mxu0 0
        %886 = vmatpush1.bf16.xpose.msra.mxu0 0
        %887 = vmatprep.subr.bf16.mxu0 0
        %888 = vmatpush1.bf16.xpose.msra.mxu0 0
        %889 = vmatprep.subr.bf16.mxu0 0
        %890 = vmatpush1.bf16.xpose.msra.mxu0 0
        %891 = vmatprep.subr.bf16.mxu0 0
        %892 = vmatpush1.bf16.xpose.msra.mxu0 0
        %893 = vmatprep.mubr.bf16.mxu0 0
        %894 = vmatmul.mubr.bf16.gmra.mrb[0].mxu0 %v856
        %v895 = vpop.f32.mrb[0].mxu0
        %v896 = vadd.f32 %v423, %v895
        %v897 = vpop.f32.mrb[0].mxu0
        %v898 = vpop.f32.mrb[0].mxu0
        %v899 = vpop.f32.mrb[0].mxu0
        %900 = vdwg.mxu0
        %v901 = vsel %vm630, %v896, -inf
        %902 = vmax.xlane.f32.xlu0 %v901
        %v903 = vpop.xlane.xlu0 %902
        %v904 = vsub.f32 %v896, %v903
        %v905 = vmul.f32 %v904, 1.442695
        %v906 = vpow.pop %v905
        %v907 = vsel %vm630, %v906, 0.0
        %908 = vadd.xlane.f32.xlu0 %v907
        %v909 = vpop.xlane.xlu0 %908
        %v910 = vpack.c.bf16 %v906, %v906
        %911 = vrot.lane.b32.xlu0 %v629, 112
        %v912 = vpop.permute.xlu0 %911
        %v914 = vsel %vm630, %v910, 0
        %v917 = vsel %vm690, %v912, 0
        %919 = vmatprep.subr.bf16.mxu0 0
        %920 = vmatpush1.bf16.msra.mxu0 %v917
        %921 = vmatprep.subr.bf16.mxu0 0
        %922 = vmatpush1.bf16.msra.mxu0 0
        %923 = vmatprep.subr.bf16.mxu0 0
        %924 = vmatpush1.bf16.msra.mxu0 0
        %925 = vmatprep.subr.bf16.mxu0 0
        %926 = vmatpush1.bf16.msra.mxu0 0
        %927 = vmatprep.subr.bf16.mxu0 0
        %928 = vmatpush1.bf16.msra.mxu0 0
        %929 = vmatprep.subr.bf16.mxu0 0
        %930 = vmatpush1.bf16.msra.mxu0 0
        %931 = vmatprep.subr.bf16.mxu0 0
        %932 = vmatpush1.bf16.msra.mxu0 0
        %933 = vmatprep.subr.bf16.mxu0 0
        %934 = vmatpush1.bf16.msra.mxu0 0
        %935 = vmatprep.subr.bf16.mxu0 0
        %936 = vmatpush1.bf16.msra.mxu0 0
        %937 = vmatprep.subr.bf16.mxu0 0
        %938 = vmatpush1.bf16.msra.mxu0 0
        %939 = vmatprep.subr.bf16.mxu0 0
        %940 = vmatpush1.bf16.msra.mxu0 0
        %941 = vmatprep.subr.bf16.mxu0 0
        %942 = vmatpush1.bf16.msra.mxu0 0
        %943 = vmatprep.subr.bf16.mxu0 0
        %944 = vmatpush1.bf16.msra.mxu0 0
        %945 = vmatprep.subr.bf16.mxu0 0
        %946 = vmatpush1.bf16.msra.mxu0 0
        %947 = vmatprep.subr.bf16.mxu0 0
        %948 = vmatpush1.bf16.msra.mxu0 0
        %949 = vmatprep.subr.bf16.mxu0 0
        %950 = vmatpush1.bf16.msra.mxu0 0
        %951 = vmatprep.mubr.bf16.mxu0 0
        %952 = vmatmul.mubr.bf16.gmra.mrb[0].mxu0 %v914
        %v953 = vpop.f32.mrb[0].mxu0
        %v954 = vadd.f32 0.0, %v953
        %v955 = vpop.f32.mrb[0].mxu0
        %v956 = vpop.f32.mrb[0].mxu0
        %v957 = vpop.f32.mrb[0].mxu0
        %958 = vdwg.mxu0
        %v959 = vrcp.pop %v909
        %v960 = vmul.f32 %v954, %v959
        %v961 = vpack.c.bf16 %v960, %v960
        %962 = vrot.lane.b32.xlu0 %v627, 104
        %v963 = vpop.permute.xlu0 %962
        %964 = vrot.lane.b32.xlu0 %v628, 104
        %v965 = vpop.permute.xlu0 %964
        %v967 = vsel %vm630, %v963, 0
        %v970 = vsel %vm630, %v965, 0
        %972 = vmatprep.subr.bf16.mxu0 0
        %973 = vmatpush1.bf16.xpose.msra.mxu0 %v970
        %974 = vmatprep.subr.bf16.mxu0 0
        %975 = vmatpush1.bf16.xpose.msra.mxu0 0
        %976 = vmatprep.subr.bf16.mxu0 0
        %977 = vmatpush1.bf16.xpose.msra.mxu0 0
        %978 = vmatprep.subr.bf16.mxu0 0
        %979 = vmatpush1.bf16.xpose.msra.mxu0 0
        %980 = vmatprep.subr.bf16.mxu0 0
        %981 = vmatpush1.bf16.xpose.msra.mxu0 0
        %982 = vmatprep.subr.bf16.mxu0 0
        %983 = vmatpush1.bf16.xpose.msra.mxu0 0
        %984 = vmatprep.subr.bf16.mxu0 0
        %985 = vmatpush1.bf16.xpose.msra.mxu0 0
        %986 = vmatprep.subr.bf16.mxu0 0
        %987 = vmatpush1.bf16.xpose.msra.mxu0 0
        %988 = vmatprep.subr.bf16.mxu0 0
        %989 = vmatpush1.bf16.xpose.msra.mxu0 0
        %990 = vmatprep.subr.bf16.mxu0 0
        %991 = vmatpush1.bf16.xpose.msra.mxu0 0
        %992 = vmatprep.subr.bf16.mxu0 0
        %993 = vmatpush1.bf16.xpose.msra.mxu0 0
        %994 = vmatprep.subr.bf16.mxu0 0
        %995 = vmatpush1.bf16.xpose.msra.mxu0 0
        %996 = vmatprep.subr.bf16.mxu0 0
        %997 = vmatpush1.bf16.xpose.msra.mxu0 0
        %998 = vmatprep.subr.bf16.mxu0 0
        %999 = vmatpush1.bf16.xpose.msra.mxu0 0
        %1000 = vmatprep.subr.bf16.mxu0 0
        %1001 = vmatpush1.bf16.xpose.msra.mxu0 0
        %1002 = vmatprep.subr.bf16.mxu0 0
        %1003 = vmatpush1.bf16.xpose.msra.mxu0 0
        %1004 = vmatprep.mubr.bf16.mxu0 0
        %1005 = vmatmul.mubr.bf16.gmra.mrb[0].mxu0 %v967
        %v1006 = vpop.f32.mrb[0].mxu0
        %v1007 = vadd.f32 %v423, %v1006
        %v1008 = vpop.f32.mrb[0].mxu0
        %v1009 = vpop.f32.mrb[0].mxu0
        %v1010 = vpop.f32.mrb[0].mxu0
        %1011 = vdwg.mxu0
        %v1012 = vsel %vm630, %v1007, -inf
        %1013 = vmax.xlane.f32.xlu0 %v1012
        %v1014 = vpop.xlane.xlu0 %1013
        %v1015 = vsub.f32 %v1007, %v1014
        %v1016 = vmul.f32 %v1015, 1.442695
        %v1017 = vpow.pop %v1016
        %v1018 = vsel %vm630, %v1017, 0.0
        %1019 = vadd.xlane.f32.xlu0 %v1018
        %v1020 = vpop.xlane.xlu0 %1019
        %v1021 = vpack.c.bf16 %v1017, %v1017
        %1022 = vrot.lane.b32.xlu0 %v629, 104
        %v1023 = vpop.permute.xlu0 %1022
        %v1025 = vsel %vm630, %v1021, 0
        %v1028 = vsel %vm690, %v1023, 0
        %1030 = vmatprep.subr.bf16.mxu0 0
        %1031 = vmatpush1.bf16.msra.mxu0 %v1028
        %1032 = vmatprep.subr.bf16.mxu0 0
        %1033 = vmatpush1.bf16.msra.mxu0 0
        %1034 = vmatprep.subr.bf16.mxu0 0
        %1035 = vmatpush1.bf16.msra.mxu0 0
        %1036 = vmatprep.subr.bf16.mxu0 0
        %1037 = vmatpush1.bf16.msra.mxu0 0
        %1038 = vmatprep.subr.bf16.mxu0 0
        %1039 = vmatpush1.bf16.msra.mxu0 0
        %1040 = vmatprep.subr.bf16.mxu0 0
        %1041 = vmatpush1.bf16.msra.mxu0 0
        %1042 = vmatprep.subr.bf16.mxu0 0
        %1043 = vmatpush1.bf16.msra.mxu0 0
        %1044 = vmatprep.subr.bf16.mxu0 0
        %1045 = vmatpush1.bf16.msra.mxu0 0
        %1046 = vmatprep.subr.bf16.mxu0 0
        %1047 = vmatpush1.bf16.msra.mxu0 0
        %1048 = vmatprep.subr.bf16.mxu0 0
        %1049 = vmatpush1.bf16.msra.mxu0 0
        %1050 = vmatprep.subr.bf16.mxu0 0
        %1051 = vmatpush1.bf16.msra.mxu0 0
        %1052 = vmatprep.subr.bf16.mxu0 0
        %1053 = vmatpush1.bf16.msra.mxu0 0
        %1054 = vmatprep.subr.bf16.mxu0 0
        %1055 = vmatpush1.bf16.msra.mxu0 0
        %1056 = vmatprep.subr.bf16.mxu0 0
        %1057 = vmatpush1.bf16.msra.mxu0 0
        %1058 = vmatprep.subr.bf16.mxu0 0
        %1059 = vmatpush1.bf16.msra.mxu0 0
        %1060 = vmatprep.subr.bf16.mxu0 0
        %1061 = vmatpush1.bf16.msra.mxu0 0
        %1062 = vmatprep.mubr.bf16.mxu0 0
        %1063 = vmatmul.mubr.bf16.gmra.mrb[0].mxu0 %v1025
        %v1064 = vpop.f32.mrb[0].mxu0
        %v1065 = vadd.f32 0.0, %v1064
        %v1066 = vpop.f32.mrb[0].mxu0
        %v1067 = vpop.f32.mrb[0].mxu0
        %v1068 = vpop.f32.mrb[0].mxu0
        %1069 = vdwg.mxu0
        %v1070 = vrcp.pop %v1020
        %v1071 = vmul.f32 %v1065, %v1070
        %v1072 = vpack.c.bf16 %v1071, %v1071
        %1074 = vrot.lane.b32.xlu0 %v850, 8
        %v1075 = vpop.permute.xlu0 %1074
        %1077 = vrot.lane.b32.xlu0 %v961, 16
        %v1078 = vpop.permute.xlu0 %1077
        %1080 = vrot.lane.b32.xlu0 %v1072, 24
        %v1081 = vpop.permute.xlu0 %1080
        %v1084 = vsel %vm630, %v736, %v1075
        %vm1085 = vcmask 130048
        %v1087 = vsel %vm1085, %v1084, %v1078
        %vm1088 = vcmask 195584
        %v1090 = vsel %vm1088, %v1087, %v1081
        %v1091 = vld [vmem:[%s6] sm:$0xf]
        %v1092 = vld [vmem:[%s6 + $0x4] sm:$0xf]
        %v1093 = vld [vmem:[%s6 + $0x8] sm:$0xf]
        %v1094 = vld [vmem:[%s6 + $0xc] sm:$0xf]
        %v1095 = vld [vmem:[%s7] sm:$0x1]
        %v1097 = vlaneseq
        %v1098 = vshrl.u32 %v1097, 7
        %v1099 = vsub.s32 0, %v1098
        %v1100 = vrot.slane %v1095, %v1099
        %v1106 = vunpack.c.l.b16 %v1091
        %v1107 = vunpack.c.l.b16 %v1092
        %v1108 = vunpack.c.l.b16 %v1093
        %v1109 = vunpack.c.l.b16 %v1094
        %v1110 = vpack.c.b16 %v1107, %v1106
        %v1111 = vpack.c.b16 %v1109, %v1108
        %v1114 = vsel %vm447, %v1090, 0
        %1116 = vmatprep.subr.bf16.mxu0 0
        %1117 = vmatpush1.bf16.msra.mxu0 %v1110
        %1118 = vmatprep.subr.bf16.mxu0 0
        %1119 = vmatpush1.bf16.msra.mxu0 %v1111
        %1120 = vmatprep.subr.bf16.mxu0 0
        %1121 = vmatpush1.bf16.msra.mxu0 0
        %1122 = vmatprep.subr.bf16.mxu0 0
        %1123 = vmatpush1.bf16.msra.mxu0 0
        %1124 = vmatprep.subr.bf16.mxu0 0
        %1125 = vmatpush1.bf16.msra.mxu0 0
        %1126 = vmatprep.subr.bf16.mxu0 0
        %1127 = vmatpush1.bf16.msra.mxu0 0
        %1128 = vmatprep.subr.bf16.mxu0 0
        %1129 = vmatpush1.bf16.msra.mxu0 0
        %1130 = vmatprep.subr.bf16.mxu0 0
        %1131 = vmatpush1.bf16.msra.mxu0 0
        %1132 = vmatprep.subr.bf16.mxu0 0
        %1133 = vmatpush1.bf16.msra.mxu0 0
        %1134 = vmatprep.subr.bf16.mxu0 0
        %1135 = vmatpush1.bf16.msra.mxu0 0
        %1136 = vmatprep.subr.bf16.mxu0 0
        %1137 = vmatpush1.bf16.msra.mxu0 0
        %1138 = vmatprep.subr.bf16.mxu0 0
        %1139 = vmatpush1.bf16.msra.mxu0 0
        %1140 = vmatprep.subr.bf16.mxu0 0
        %1141 = vmatpush1.bf16.msra.mxu0 0
        %1142 = vmatprep.subr.bf16.mxu0 0
        %1143 = vmatpush1.bf16.msra.mxu0 0
        %1144 = vmatprep.subr.bf16.mxu0 0
        %1145 = vmatpush1.bf16.msra.mxu0 0
        %1146 = vmatprep.subr.bf16.mxu0 0
        %1147 = vmatpush1.bf16.msra.mxu0 0
        %1148 = vmatprep.mubr.bf16.mxu0 0
        %1149 = vmatmul.mubr.bf16.gmra.mrb[0].mxu0 %v1114
        %v1150 = vpop.f32.mrb[0].mxu0
        %v1151 = vadd.f32 %v1100, %v1150
        %v1152 = vpop.f32.mrb[0].mxu0
        %v1153 = vpop.f32.mrb[0].mxu0
        %v1154 = vpop.f32.mrb[0].mxu0
        %1155 = vdwg.mxu0
        %1156 = vst.msk [vmem:[%s418] sm:$0xff] %vm447, %v1151
        %s1157 = sand.u32 %s220, 1
        %s1158 = scalar_lea.sflag [#allocation4], %s1157
        %s1159 = sand.u32 %s220, 1
        %s1160 = smul.addr %s1159, 8
        %s1161 = scalar_lea.vmem [#allocation11], %s1160
        // Predicated region
        $region73: #{tpu_custom_call.1} parent=51 // pred_check
          %p1162 = pneg %p230
        $region74: #{tpu_custom_call.1} parent=51 // pred_check_branch
          %1164 = sbr.rel (%p1162) target = $region76
        $region75: #{tpu_custom_call.1} parent=51 // pred_region
          %s1166 = ssub.s32 128, 128
          %1167 = vsyncadd %s1158, %s1166
          %s1168 = smul.addr %s29, 128
          %s1169 = scalar_lea.hbm %s8, %s1168
          %s1171 = sshll.u32 %s1161, 4
          %s1172 = int_to_ptr.vmem [resolvable:$true] %s1171
          %1174 = dma.vmem_to_hbm [thread:$0]  %s1172, 128, %s1169, %s1158
        $region76: #{tpu_custom_call.1} parent=51 // pred_fallthru
          _
      $region52: #{tpu_custom_call.1} parent=5 // pred_fallthru
        _
      %p1175 = scmp.le.s32.totalorder 2, %s24
      // Predicated region
      $region77: #{tpu_custom_call.1} parent=5 // pred_check
        %p1176 = pneg %p1175
      $region78: #{tpu_custom_call.1} parent=5 // pred_check_branch
        %1178 = sbr.rel (%p1176) target = $region80
      $region79: #{tpu_custom_call.1} parent=5 // pred_region
        %s1179 = ssub.s32 %s24, 2
        // Predicated region
        $region81: #{tpu_custom_call.1} parent=79 // pred_check
          %p1180 = pneg %p236
        $region82: #{tpu_custom_call.1} parent=79 // pred_check_branch
          %1182 = sbr.rel (%p1180) target = $region84
        $region83: #{tpu_custom_call.1} parent=79 // pred_region
          %s1183 = sand.u32 %s221, 1
          %s1184 = scalar_lea.sflag [#allocation4], %s1183
          %s1185 = sand.u32 %s221, 1
          %s1186 = smul.addr %s1185, 8
          %s1187 = scalar_lea.vmem [#allocation11], %s1186
          %1188 = dma.done %s1184, 128
        $region84: #{tpu_custom_call.1} parent=79 // pred_fallthru
          _
      $region80: #{tpu_custom_call.1} parent=5 // pred_fallthru
        _
    $region6: #{tpu_custom_call.1} parent=1 // loop_footer
      %s28 = sadd.s32 1, %s24
    $region7: #{tpu_custom_call.1} parent=1 // loop_footer_branch
      %23 = sbr.rel target = $region3
    $region8: #{tpu_custom_call.1} parent=1 // loop_exit
      _
    %1189 = vsyncpa [#allocation3], 1
    %s1190 = scalar_lea.sflag [#allocation3], 1
    %1191 = vsyncpa %s1190, 1
    %1192 = vsyncpa [#allocation6], 1
    %s1193 = scalar_lea.sflag [#allocation6], 1
    %1194 = vsyncpa %s1193, 1
    %1195 = vsyncpa [#allocation9], 1
    %1196 = vsyncpa [#allocation4], 1
    %s1197 = scalar_lea.sflag [#allocation4], 1
    %1198 = vsyncpa %s1197, 1

</llo_original>
